<compile_context>
chip_gen: v6e
topology: v6e:2x2x1
jax: 0.10.0
libtpu: 0.0.40
codegen_flags: <defaults>
</compile_context>

<pallas_src>
import math

import jax
import jax.numpy as jnp
from jax import lax
from jax.experimental import pallas as pl
from jax.experimental.pallas import tpu as pltpu


# ------------------------------ SaS weights -------------------------------- #

def sas_effective_weights(m, pi, chi):
    """mu = (1-pi)*m ; dw = rho - mu**2 with rho = (1-pi)*(chi + m**2).

    For pi in [0,1], chi >= 0 (SaSLayer.clamp), dw >= 0, so the sqrt argument
    (inputs**2 @ dw + 1e-10) is always >= 1e-10.
    """
    mu = (1.0 - pi) * m
    rho = (1.0 - pi) * (chi + m * m)
    return mu, rho - mu * mu


# ------------------------------ Fused kernel -------------------------------- #

def _make_fused_kernel(seq_len, batch, vocab, hidden):
    """Whole VanillaRNN-SaS forward in one kernel invocation (no grid)."""
    sb = seq_len * batch

    def kernel(tok_ref, emb_ref,
               mu_in_ref, dw_in_ref,
               mu_h_ref, dw_h_ref,
               mu_o_ref, dw_o_ref,
               eps_in_ref, eps_h_ref, eps_out_ref,
               logits_ref, hs_ref,
               x_in_ref):
        # ---- 1. embedding gather: exact one-hot row selection on the MXU ----
        tok = tok_ref[...]                                        # (SB, 1) int32
        onehot = (lax.broadcasted_iota(jnp.int32, (sb, vocab), 1) == tok
                  ).astype(jnp.float32)                           # (SB, V)
        x_emb = jnp.dot(onehot, emb_ref[...],
                        preferred_element_type=jnp.float32)       # (SB, E)

        # ---- 2. input SaS layer (all S*B rows in one MXU pass) --------------
        g_in = jnp.dot(x_emb, mu_in_ref[...],
                       preferred_element_type=jnp.float32)
        d2_in = jnp.dot(x_emb * x_emb, dw_in_ref[...],
                        preferred_element_type=jnp.float32)
        # dw >= 0 and inputs**2 >= 0, so d2 >= 0; 1e-10 floor matches torch.
        x_in_ref[...] = g_in + eps_in_ref[...] * jnp.sqrt(d2_in + 1e-10)

        # ---- 3. recurrence: h_s = tanh(SaS_hidden(h_{s-1}) + x_in[s]) -------
        mu_h = mu_h_ref[...]                                      # hoisted loads
        dw_h = dw_h_ref[...]

        def step(s, h):
            row = s * batch                                       # sublane-aligned (batch=8)
            g_h = jnp.dot(h, mu_h, preferred_element_type=jnp.float32)
            d2_h = jnp.dot(h * h, dw_h, preferred_element_type=jnp.float32)
            z = g_h + eps_h_ref[pl.ds(row, batch), :] * jnp.sqrt(d2_h + 1e-10)
            h_new = jnp.tanh(z + x_in_ref[pl.ds(row, batch), :])
            hs_ref[pl.ds(row, batch), :] = h_new
            return h_new

        unroll = True if seq_len <= 32 else 8
        lax.fori_loop(0, seq_len, step,
                      jnp.zeros((batch, hidden), jnp.float32), unroll=unroll)

        # ---- 4. readout SaS layer over all stacked hidden states ------------
        hs = hs_ref[...]                                          # (SB, H)
        g_o = jnp.dot(hs, mu_o_ref[...], preferred_element_type=jnp.float32)
        d2_o = jnp.dot(hs * hs, dw_o_ref[...],
                       preferred_element_type=jnp.float32)
        logits_ref[...] = g_o + eps_out_ref[...] * jnp.sqrt(d2_o + 1e-10)

    return kernel


# --------------------------------- Wrapper ---------------------------------- #

@jax.jit
def vanilla_rnn_sas_forward(tokens, embedding, params_in, params_hid, params_out,
                            eps_in, eps_h, eps_out):
    """tokens: (S, B) int32. Returns (logits (S*B, V), outputs (S, B, H), h (B, H))."""
    s_len, b = tokens.shape
    vocab = embedding.shape[0]
    h_dim = params_hid[0].shape[0]
    sb = s_len * b

    mu_in, dw_in = sas_effective_weights(*params_in)
    mu_h, dw_h = sas_effective_weights(*params_hid)
    mu_o, dw_o = sas_effective_weights(*params_out)

    tok2d = tokens.reshape(sb, 1).astype(jnp.int32)
    eps_h2d = eps_h.reshape(sb, h_dim)

    vmem_spec = pl.BlockSpec(memory_space=pltpu.MemorySpace.VMEM)
    logits, hs = pl.pallas_call(
        _make_fused_kernel(s_len, b, vocab, h_dim),
        out_shape=(jax.ShapeDtypeStruct((sb, vocab), jnp.float32),
                   jax.ShapeDtypeStruct((sb, h_dim), jnp.float32)),
        in_specs=[vmem_spec] * 11,
        out_specs=(vmem_spec, vmem_spec),
        scratch_shapes=[pltpu.VMEM((sb, h_dim), jnp.float32)],   # x_in staging
    )(tok2d, embedding, mu_in, dw_in, mu_h, dw_h, mu_o, dw_o,
      eps_in, eps_h2d, eps_out)

    outputs = hs.reshape(s_len, b, h_dim)
    return logits, outputs, outputs[-1]


# --------------------------- Pure-JAX reference ----------------------------- #

def reference_forward(tokens, embedding, params_in, params_hid, params_out,
                      eps_in, eps_h, eps_out):
    hp = lax.Precision.HIGHEST

    def sas(v, params, eps):
        mu, dw = sas_effective_weights(*params)
        g = jnp.dot(v, mu, precision=hp)
        d2 = jnp.dot(v * v, dw, precision=hp)
        return g + eps * jnp.sqrt(d2 + 1e-10)

    s_len, b = tokens.shape
    h_dim = params_hid[0].shape[0]
    x = embedding[tokens.reshape(-1)]
    x_in = sas(x, params_in, eps_in).reshape(s_len, b, h_dim)
    h = jnp.zeros((b, h_dim), jnp.float32)
    outs = []
    for s in range(s_len):
        h = jnp.tanh(sas(h, params_hid, eps_h[s]) + x_in[s])
        outs.append(h)
    outs = jnp.stack(outs, axis=0)
    logits = sas(outs.reshape(s_len * b, h_dim), params_out, eps_out)
    return logits, outs, h


# --------------------------------- Params ----------------------------------- #

def sas_params(key, in_features, out_features):
    """SaSLayer parameters. resetParameters() sets pi = chi = 0 (making the
    Delta^2 branch identically zero); here we draw small values in the clamped
    ranges (pi in [0,1], chi >= 0, as SaSLayer.clamp enforces) so the full
    forward math is exercised. Forward semantics are unchanged."""
    km, kp, kc = jax.random.split(key, 3)
    bound = 1.0 / math.sqrt(in_features)
    m = jax.random.uniform(km, (in_features, out_features), jnp.float32,
                           minval=-bound, maxval=bound)
    pi = jax.random.uniform(kp, (in_features, out_features), jnp.float32,
                            minval=0.0, maxval=0.2)
    chi = jax.random.uniform(kc, (in_features, out_features), jnp.float32,
                             minval=0.0, maxval=0.05)
    return m, pi, chi


# ---------------------------------- Main ------------------------------------ #

if __name__ == "__main__":
    # VanillaRNN(vocabularySize=256, embeddingSize=32, hiddenSize=128, isSaS=True)
    # on an (S=8, B=8) token batch.  H=128 / V=256 keep stores lane-dense; B=8
    # fills the sublanes.
    S, B, V, E, H = 8, 8, 256, 32, 128

    key = jax.random.PRNGKey(0)
    (k_tok, k_emb, k_pin, k_phid, k_pout,
     k_ein, k_eh, k_eout) = jax.random.split(key, 8)

    tokens = jax.random.randint(k_tok, (S, B), 0, V, dtype=jnp.int32)
    embedding = jax.random.normal(k_emb, (V, E), jnp.float32)   # nn.Embedding ~ N(0,1)

    params_in = sas_params(k_pin, E, H)      # inputLayer  (E -> H)
    params_hid = sas_params(k_phid, H, H)    # hiddenLayer (H -> H)
    params_out = sas_params(k_pout, H, V)    # readout     (H -> V)

    eps_in = jax.random.normal(k_ein, (S * B, H), jnp.float32)
    eps_h = jax.random.normal(k_eh, (S, B, H), jnp.float32)
    eps_out = jax.random.normal(k_eout, (S * B, V), jnp.float32)

    logits, outputs, h_final = vanilla_rnn_sas_forward(
        tokens, embedding, params_in, params_hid, params_out,
        eps_in, eps_h, eps_out)
    jax.block_until_ready((logits, outputs, h_final))

    ref_logits, ref_outputs, ref_h = reference_forward(
        tokens, embedding, params_in, params_hid, params_out,
        eps_in, eps_h, eps_out)

    assert jnp.allclose(outputs, ref_outputs, atol=1e-4, rtol=1e-4), "rnn outputs mismatch"
    assert jnp.allclose(h_final, ref_h, atol=1e-4, rtol=1e-4), "final hidden state mismatch"
    assert jnp.allclose(logits, ref_logits, atol=1e-4, rtol=1e-4), "readout logits mismatch"

    print("KERNEL_OK")
</pallas_src>

<mosaic_0001>
module attributes {stable_mosaic.version = 11 : i64} {
  func.func @kernel(%arg0: memref<64x1xi32, #tpu.memory_space<vmem>>, %arg1: memref<256x32xf32, #tpu.memory_space<vmem>>, %arg2: memref<32x128xf32, #tpu.memory_space<vmem>>, %arg3: memref<32x128xf32, #tpu.memory_space<vmem>>, %arg4: memref<128x128xf32, #tpu.memory_space<vmem>>, %arg5: memref<128x128xf32, #tpu.memory_space<vmem>>, %arg6: memref<128x256xf32, #tpu.memory_space<vmem>>, %arg7: memref<128x256xf32, #tpu.memory_space<vmem>>, %arg8: memref<64x128xf32, #tpu.memory_space<vmem>>, %arg9: memref<64x128xf32, #tpu.memory_space<vmem>>, %arg10: memref<64x256xf32, #tpu.memory_space<vmem>>, %arg11: memref<64x256xf32, #tpu.memory_space<vmem>>, %arg12: memref<64x128xf32, #tpu.memory_space<vmem>>, %arg13: memref<64x128xf32, #tpu.memory_space<vmem>>) attributes {dimension_semantics = [], scalar_prefetch = 0 : i64, scratch_operands = 1 : i64, tpu.core_type = #tpu.core_type<tc>} {
    %c0 = arith.constant 0 : index
    %c0_0 = arith.constant 0 : index
    %0 = vector.load %arg0[%c0, %c0_0] : memref<64x1xi32, #tpu.memory_space<vmem>>, vector<64x1xi32>
    %1 = tpu.iota {dimensions = array<i32: 1>} : vector<64x256xi32>
    %2 = vector.broadcast %0 : vector<64x1xi32> to vector<64x256xi32>
    %3 = arith.cmpi eq, %1, %2 : vector<64x256xi32>
    %4 = arith.extui %3 : vector<64x256xi1> to vector<64x256xi32>
    %5 = arith.sitofp %4 : vector<64x256xi32> to vector<64x256xf32>
    %c0_1 = arith.constant 0 : index
    %c0_2 = arith.constant 0 : index
    %6 = vector.load %arg1[%c0_1, %c0_2] : memref<256x32xf32, #tpu.memory_space<vmem>>, vector<256x32xf32>
    %cst = arith.constant dense<0.000000e+00> : vector<64x32xf32>
    %7 = tpu.matmul %5, %6, %cst {dimension_numbers = #tpu.dot_dimension_numbers<[1], [0], [0], [1], [0, 0, 1, 1], [], []>} : vector<64x256xf32>, vector<256x32xf32>, vector<64x32xf32> -> vector<64x32xf32>
    %c0_3 = arith.constant 0 : index
    %c0_4 = arith.constant 0 : index
    %8 = vector.load %arg2[%c0_3, %c0_4] : memref<32x128xf32, #tpu.memory_space<vmem>>, vector<32x128xf32>
    %cst_5 = arith.constant dense<0.000000e+00> : vector<64x128xf32>
    %9 = tpu.matmul %7, %8, %cst_5 {dimension_numbers = #tpu.dot_dimension_numbers<[1], [0], [0], [1], [0, 0, 1, 1], [], []>} : vector<64x32xf32>, vector<32x128xf32>, vector<64x128xf32> -> vector<64x128xf32>
    %10 = arith.mulf %7, %7 : vector<64x32xf32>
    %c0_6 = arith.constant 0 : index
    %c0_7 = arith.constant 0 : index
    %11 = vector.load %arg3[%c0_6, %c0_7] : memref<32x128xf32, #tpu.memory_space<vmem>>, vector<32x128xf32>
    %cst_8 = arith.constant dense<0.000000e+00> : vector<64x128xf32>
    %12 = tpu.matmul %10, %11, %cst_8 {dimension_numbers = #tpu.dot_dimension_numbers<[1], [0], [0], [1], [0, 0, 1, 1], [], []>} : vector<64x32xf32>, vector<32x128xf32>, vector<64x128xf32> -> vector<64x128xf32>
    %c0_9 = arith.constant 0 : index
    %c0_10 = arith.constant 0 : index
    %13 = vector.load %arg8[%c0_9, %c0_10] : memref<64x128xf32, #tpu.memory_space<vmem>>, vector<64x128xf32>
    %cst_11 = arith.constant 1.000000e-10 : f32
    %14 = vector.broadcast %cst_11 : f32 to vector<64x128xf32>
    %15 = arith.addf %12, %14 : vector<64x128xf32>
    %16 = math.sqrt %15 : vector<64x128xf32>
    %17 = arith.mulf %13, %16 : vector<64x128xf32>
    %18 = arith.addf %9, %17 : vector<64x128xf32>
    %c0_12 = arith.constant 0 : index
    %c0_13 = arith.constant 0 : index
    %19 = vector.load %arg13[%c0_12, %c0_13] : memref<64x128xf32, #tpu.memory_space<vmem>>, vector<64x128xf32>
    tpu.vector_store %arg13[%c0_12, %c0_13], %18 {strides = array<i32>} : memref<64x128xf32, #tpu.memory_space<vmem>>, vector<64x128xf32>,
    %c0_14 = arith.constant 0 : index
    %c0_15 = arith.constant 0 : index
    %20 = vector.load %arg4[%c0_14, %c0_15] : memref<128x128xf32, #tpu.memory_space<vmem>>, vector<128x128xf32>
    %c0_16 = arith.constant 0 : index
    %c0_17 = arith.constant 0 : index
    %21 = vector.load %arg5[%c0_16, %c0_17] : memref<128x128xf32, #tpu.memory_space<vmem>>, vector<128x128xf32>
    %cst_18 = arith.constant 0.000000e+00 : f32
    %22 = vector.broadcast %cst_18 : f32 to vector<8x128xf32>
    %c0_i32 = arith.constant 0 : i32
    %c8_i32 = arith.constant 8 : i32
    %23 = arith.muli %c0_i32, %c8_i32 : i32
    %cst_19 = arith.constant dense<0.000000e+00> : vector<8x128xf32>
    %24 = tpu.matmul %22, %20, %cst_19 {dimension_numbers = #tpu.dot_dimension_numbers<[1], [0], [0], [1], [0, 0, 1, 1], [], []>} : vector<8x128xf32>, vector<128x128xf32>, vector<8x128xf32> -> vector<8x128xf32>
    %25 = arith.mulf %22, %22 : vector<8x128xf32>
    %cst_20 = arith.constant dense<0.000000e+00> : vector<8x128xf32>
    %26 = tpu.matmul %25, %21, %cst_20 {dimension_numbers = #tpu.dot_dimension_numbers<[1], [0], [0], [1], [0, 0, 1, 1], [], []>} : vector<8x128xf32>, vector<128x128xf32>, vector<8x128xf32> -> vector<8x128xf32>
    %27 = arith.index_cast %23 : i32 to index
    %c0_21 = arith.constant 0 : index
    %28 = vector.load %arg9[%27, %c0_21] : memref<64x128xf32, #tpu.memory_space<vmem>>, vector<8x128xf32>
    %cst_22 = arith.constant 1.000000e-10 : f32
    %29 = vector.broadcast %cst_22 : f32 to vector<8x128xf32>
    %30 = arith.addf %26, %29 : vector<8x128xf32>
    %31 = math.sqrt %30 : vector<8x128xf32>
    %32 = arith.mulf %28, %31 : vector<8x128xf32>
    %33 = arith.addf %24, %32 : vector<8x128xf32>
    %34 = arith.index_cast %23 : i32 to index
    %c0_23 = arith.constant 0 : index
    %35 = vector.load %arg13[%34, %c0_23] : memref<64x128xf32, #tpu.memory_space<vmem>>, vector<8x128xf32>
    %36 = arith.addf %33, %35 : vector<8x128xf32>
    %37 = math.tanh %36 : vector<8x128xf32>
    %38 = arith.index_cast %23 : i32 to index
    %c0_24 = arith.constant 0 : index
    %39 = vector.load %arg12[%38, %c0_24] : memref<64x128xf32, #tpu.memory_space<vmem>>, vector<8x128xf32>
    tpu.vector_store %arg12[%38, %c0_24], %37 {strides = array<i32>} : memref<64x128xf32, #tpu.memory_space<vmem>>, vector<8x128xf32>,
    %c1_i32 = arith.constant 1 : i32
    %c8_i32_25 = arith.constant 8 : i32
    %40 = arith.muli %c1_i32, %c8_i32_25 : i32
    %cst_26 = arith.constant dense<0.000000e+00> : vector<8x128xf32>
    %41 = tpu.matmul %37, %20, %cst_26 {dimension_numbers = #tpu.dot_dimension_numbers<[1], [0], [0], [1], [0, 0, 1, 1], [], []>} : vector<8x128xf32>, vector<128x128xf32>, vector<8x128xf32> -> vector<8x128xf32>
    %42 = arith.mulf %37, %37 : vector<8x128xf32>
    %cst_27 = arith.constant dense<0.000000e+00> : vector<8x128xf32>
    %43 = tpu.matmul %42, %21, %cst_27 {dimension_numbers = #tpu.dot_dimension_numbers<[1], [0], [0], [1], [0, 0, 1, 1], [], []>} : vector<8x128xf32>, vector<128x128xf32>, vector<8x128xf32> -> vector<8x128xf32>
    %44 = arith.index_cast %40 : i32 to index
    %c0_28 = arith.constant 0 : index
    %45 = vector.load %arg9[%44, %c0_28] : memref<64x128xf32, #tpu.memory_space<vmem>>, vector<8x128xf32>
    %cst_29 = arith.constant 1.000000e-10 : f32
    %46 = vector.broadcast %cst_29 : f32 to vector<8x128xf32>
    %47 = arith.addf %43, %46 : vector<8x128xf32>
    %48 = math.sqrt %47 : vector<8x128xf32>
    %49 = arith.mulf %45, %48 : vector<8x128xf32>
    %50 = arith.addf %41, %49 : vector<8x128xf32>
    %51 = arith.index_cast %40 : i32 to index
    %c0_30 = arith.constant 0 : index
    %52 = vector.load %arg13[%51, %c0_30] : memref<64x128xf32, #tpu.memory_space<vmem>>, vector<8x128xf32>
    %53 = arith.addf %50, %52 : vector<8x128xf32>
    %54 = math.tanh %53 : vector<8x128xf32>
    %55 = arith.index_cast %40 : i32 to index
    %c0_31 = arith.constant 0 : index
    %56 = vector.load %arg12[%55, %c0_31] : memref<64x128xf32, #tpu.memory_space<vmem>>, vector<8x128xf32>
    tpu.vector_store %arg12[%55, %c0_31], %54 {strides = array<i32>} : memref<64x128xf32, #tpu.memory_space<vmem>>, vector<8x128xf32>,
    %c2_i32 = arith.constant 2 : i32
    %c8_i32_32 = arith.constant 8 : i32
    %57 = arith.muli %c2_i32, %c8_i32_32 : i32
    %cst_33 = arith.constant dense<0.000000e+00> : vector<8x128xf32>
    %58 = tpu.matmul %54, %20, %cst_33 {dimension_numbers = #tpu.dot_dimension_numbers<[1], [0], [0], [1], [0, 0, 1, 1], [], []>} : vector<8x128xf32>, vector<128x128xf32>, vector<8x128xf32> -> vector<8x128xf32>
    %59 = arith.mulf %54, %54 : vector<8x128xf32>
    %cst_34 = arith.constant dense<0.000000e+00> : vector<8x128xf32>
    %60 = tpu.matmul %59, %21, %cst_34 {dimension_numbers = #tpu.dot_dimension_numbers<[1], [0], [0], [1], [0, 0, 1, 1], [], []>} : vector<8x128xf32>, vector<128x128xf32>, vector<8x128xf32> -> vector<8x128xf32>
    %61 = arith.index_cast %57 : i32 to index
    %c0_35 = arith.constant 0 : index
    %62 = vector.load %arg9[%61, %c0_35] : memref<64x128xf32, #tpu.memory_space<vmem>>, vector<8x128xf32>
    %cst_36 = arith.constant 1.000000e-10 : f32
    %63 = vector.broadcast %cst_36 : f32 to vector<8x128xf32>
    %64 = arith.addf %60, %63 : vector<8x128xf32>
    %65 = math.sqrt %64 : vector<8x128xf32>
    %66 = arith.mulf %62, %65 : vector<8x128xf32>
    %67 = arith.addf %58, %66 : vector<8x128xf32>
    %68 = arith.index_cast %57 : i32 to index
    %c0_37 = arith.constant 0 : index
    %69 = vector.load %arg13[%68, %c0_37] : memref<64x128xf32, #tpu.memory_space<vmem>>, vector<8x128xf32>
    %70 = arith.addf %67, %69 : vector<8x128xf32>
    %71 = math.tanh %70 : vector<8x128xf32>
    %72 = arith.index_cast %57 : i32 to index
    %c0_38 = arith.constant 0 : index
    %73 = vector.load %arg12[%72, %c0_38] : memref<64x128xf32, #tpu.memory_space<vmem>>, vector<8x128xf32>
    tpu.vector_store %arg12[%72, %c0_38], %71 {strides = array<i32>} : memref<64x128xf32, #tpu.memory_space<vmem>>, vector<8x128xf32>,
    %c3_i32 = arith.constant 3 : i32
    %c8_i32_39 = arith.constant 8 : i32
    %74 = arith.muli %c3_i32, %c8_i32_39 : i32
    %cst_40 = arith.constant dense<0.000000e+00> : vector<8x128xf32>
    %75 = tpu.matmul %71, %20, %cst_40 {dimension_numbers = #tpu.dot_dimension_numbers<[1], [0], [0], [1], [0, 0, 1, 1], [], []>} : vector<8x128xf32>, vector<128x128xf32>, vector<8x128xf32> -> vector<8x128xf32>
    %76 = arith.mulf %71, %71 : vector<8x128xf32>
    %cst_41 = arith.constant dense<0.000000e+00> : vector<8x128xf32>
    %77 = tpu.matmul %76, %21, %cst_41 {dimension_numbers = #tpu.dot_dimension_numbers<[1], [0], [0], [1], [0, 0, 1, 1], [], []>} : vector<8x128xf32>, vector<128x128xf32>, vector<8x128xf32> -> vector<8x128xf32>
    %78 = arith.index_cast %74 : i32 to index
    %c0_42 = arith.constant 0 : index
    %79 = vector.load %arg9[%78, %c0_42] : memref<64x128xf32, #tpu.memory_space<vmem>>, vector<8x128xf32>
    %cst_43 = arith.constant 1.000000e-10 : f32
    %80 = vector.broadcast %cst_43 : f32 to vector<8x128xf32>
    %81 = arith.addf %77, %80 : vector<8x128xf32>
    %82 = math.sqrt %81 : vector<8x128xf32>
    %83 = arith.mulf %79, %82 : vector<8x128xf32>
    %84 = arith.addf %75, %83 : vector<8x128xf32>
    %85 = arith.index_cast %74 : i32 to index
    %c0_44 = arith.constant 0 : index
    %86 = vector.load %arg13[%85, %c0_44] : memref<64x128xf32, #tpu.memory_space<vmem>>, vector<8x128xf32>
    %87 = arith.addf %84, %86 : vector<8x128xf32>
    %88 = math.tanh %87 : vector<8x128xf32>
    %89 = arith.index_cast %74 : i32 to index
    %c0_45 = arith.constant 0 : index
    %90 = vector.load %arg12[%89, %c0_45] : memref<64x128xf32, #tpu.memory_space<vmem>>, vector<8x128xf32>
    tpu.vector_store %arg12[%89, %c0_45], %88 {strides = array<i32>} : memref<64x128xf32, #tpu.memory_space<vmem>>, vector<8x128xf32>,
    %c4_i32 = arith.constant 4 : i32
    %c8_i32_46 = arith.constant 8 : i32
    %91 = arith.muli %c4_i32, %c8_i32_46 : i32
    %cst_47 = arith.constant dense<0.000000e+00> : vector<8x128xf32>
    %92 = tpu.matmul %88, %20, %cst_47 {dimension_numbers = #tpu.dot_dimension_numbers<[1], [0], [0], [1], [0, 0, 1, 1], [], []>} : vector<8x128xf32>, vector<128x128xf32>, vector<8x128xf32> -> vector<8x128xf32>
    %93 = arith.mulf %88, %88 : vector<8x128xf32>
    %cst_48 = arith.constant dense<0.000000e+00> : vector<8x128xf32>
    %94 = tpu.matmul %93, %21, %cst_48 {dimension_numbers = #tpu.dot_dimension_numbers<[1], [0], [0], [1], [0, 0, 1, 1], [], []>} : vector<8x128xf32>, vector<128x128xf32>, vector<8x128xf32> -> vector<8x128xf32>
    %95 = arith.index_cast %91 : i32 to index
    %c0_49 = arith.constant 0 : index
    %96 = vector.load %arg9[%95, %c0_49] : memref<64x128xf32, #tpu.memory_space<vmem>>, vector<8x128xf32>
    %cst_50 = arith.constant 1.000000e-10 : f32
    %97 = vector.broadcast %cst_50 : f32 to vector<8x128xf32>
    %98 = arith.addf %94, %97 : vector<8x128xf32>
    %99 = math.sqrt %98 : vector<8x128xf32>
    %100 = arith.mulf %96, %99 : vector<8x128xf32>
    %101 = arith.addf %92, %100 : vector<8x128xf32>
    %102 = arith.index_cast %91 : i32 to index
    %c0_51 = arith.constant 0 : index
    %103 = vector.load %arg13[%102, %c0_51] : memref<64x128xf32, #tpu.memory_space<vmem>>, vector<8x128xf32>
    %104 = arith.addf %101, %103 : vector<8x128xf32>
    %105 = math.tanh %104 : vector<8x128xf32>
    %106 = arith.index_cast %91 : i32 to index
    %c0_52 = arith.constant 0 : index
    %107 = vector.load %arg12[%106, %c0_52] : memref<64x128xf32, #tpu.memory_space<vmem>>, vector<8x128xf32>
    tpu.vector_store %arg12[%106, %c0_52], %105 {strides = array<i32>} : memref<64x128xf32, #tpu.memory_space<vmem>>, vector<8x128xf32>,
    %c5_i32 = arith.constant 5 : i32
    %c8_i32_53 = arith.constant 8 : i32
    %108 = arith.muli %c5_i32, %c8_i32_53 : i32
    %cst_54 = arith.constant dense<0.000000e+00> : vector<8x128xf32>
    %109 = tpu.matmul %105, %20, %cst_54 {dimension_numbers = #tpu.dot_dimension_numbers<[1], [0], [0], [1], [0, 0, 1, 1], [], []>} : vector<8x128xf32>, vector<128x128xf32>, vector<8x128xf32> -> vector<8x128xf32>
    %110 = arith.mulf %105, %105 : vector<8x128xf32>
    %cst_55 = arith.constant dense<0.000000e+00> : vector<8x128xf32>
    %111 = tpu.matmul %110, %21, %cst_55 {dimension_numbers = #tpu.dot_dimension_numbers<[1], [0], [0], [1], [0, 0, 1, 1], [], []>} : vector<8x128xf32>, vector<128x128xf32>, vector<8x128xf32> -> vector<8x128xf32>
    %112 = arith.index_cast %108 : i32 to index
    %c0_56 = arith.constant 0 : index
    %113 = vector.load %arg9[%112, %c0_56] : memref<64x128xf32, #tpu.memory_space<vmem>>, vector<8x128xf32>
    %cst_57 = arith.constant 1.000000e-10 : f32
    %114 = vector.broadcast %cst_57 : f32 to vector<8x128xf32>
    %115 = arith.addf %111, %114 : vector<8x128xf32>
    %116 = math.sqrt %115 : vector<8x128xf32>
    %117 = arith.mulf %113, %116 : vector<8x128xf32>
    %118 = arith.addf %109, %117 : vector<8x128xf32>
    %119 = arith.index_cast %108 : i32 to index
    %c0_58 = arith.constant 0 : index
    %120 = vector.load %arg13[%119, %c0_58] : memref<64x128xf32, #tpu.memory_space<vmem>>, vector<8x128xf32>
    %121 = arith.addf %118, %120 : vector<8x128xf32>
    %122 = math.tanh %121 : vector<8x128xf32>
    %123 = arith.index_cast %108 : i32 to index
    %c0_59 = arith.constant 0 : index
    %124 = vector.load %arg12[%123, %c0_59] : memref<64x128xf32, #tpu.memory_space<vmem>>, vector<8x128xf32>
    tpu.vector_store %arg12[%123, %c0_59], %122 {strides = array<i32>} : memref<64x128xf32, #tpu.memory_space<vmem>>, vector<8x128xf32>,
    %c6_i32 = arith.constant 6 : i32
    %c8_i32_60 = arith.constant 8 : i32
    %125 = arith.muli %c6_i32, %c8_i32_60 : i32
    %cst_61 = arith.constant dense<0.000000e+00> : vector<8x128xf32>
    %126 = tpu.matmul %122, %20, %cst_61 {dimension_numbers = #tpu.dot_dimension_numbers<[1], [0], [0], [1], [0, 0, 1, 1], [], []>} : vector<8x128xf32>, vector<128x128xf32>, vector<8x128xf32> -> vector<8x128xf32>
    %127 = arith.mulf %122, %122 : vector<8x128xf32>
    %cst_62 = arith.constant dense<0.000000e+00> : vector<8x128xf32>
    %128 = tpu.matmul %127, %21, %cst_62 {dimension_numbers = #tpu.dot_dimension_numbers<[1], [0], [0], [1], [0, 0, 1, 1], [], []>} : vector<8x128xf32>, vector<128x128xf32>, vector<8x128xf32> -> vector<8x128xf32>
    %129 = arith.index_cast %125 : i32 to index
    %c0_63 = arith.constant 0 : index
    %130 = vector.load %arg9[%129, %c0_63] : memref<64x128xf32, #tpu.memory_space<vmem>>, vector<8x128xf32>
    %cst_64 = arith.constant 1.000000e-10 : f32
    %131 = vector.broadcast %cst_64 : f32 to vector<8x128xf32>
    %132 = arith.addf %128, %131 : vector<8x128xf32>
    %133 = math.sqrt %132 : vector<8x128xf32>
    %134 = arith.mulf %130, %133 : vector<8x128xf32>
    %135 = arith.addf %126, %134 : vector<8x128xf32>
    %136 = arith.index_cast %125 : i32 to index
    %c0_65 = arith.constant 0 : index
    %137 = vector.load %arg13[%136, %c0_65] : memref<64x128xf32, #tpu.memory_space<vmem>>, vector<8x128xf32>
    %138 = arith.addf %135, %137 : vector<8x128xf32>
    %139 = math.tanh %138 : vector<8x128xf32>
    %140 = arith.index_cast %125 : i32 to index
    %c0_66 = arith.constant 0 : index
    %141 = vector.load %arg12[%140, %c0_66] : memref<64x128xf32, #tpu.memory_space<vmem>>, vector<8x128xf32>
    tpu.vector_store %arg12[%140, %c0_66], %139 {strides = array<i32>} : memref<64x128xf32, #tpu.memory_space<vmem>>, vector<8x128xf32>,
    %c7_i32 = arith.constant 7 : i32
    %c8_i32_67 = arith.constant 8 : i32
    %142 = arith.muli %c7_i32, %c8_i32_67 : i32
    %cst_68 = arith.constant dense<0.000000e+00> : vector<8x128xf32>
    %143 = tpu.matmul %139, %20, %cst_68 {dimension_numbers = #tpu.dot_dimension_numbers<[1], [0], [0], [1], [0, 0, 1, 1], [], []>} : vector<8x128xf32>, vector<128x128xf32>, vector<8x128xf32> -> vector<8x128xf32>
    %144 = arith.mulf %139, %139 : vector<8x128xf32>
    %cst_69 = arith.constant dense<0.000000e+00> : vector<8x128xf32>
    %145 = tpu.matmul %144, %21, %cst_69 {dimension_numbers = #tpu.dot_dimension_numbers<[1], [0], [0], [1], [0, 0, 1, 1], [], []>} : vector<8x128xf32>, vector<128x128xf32>, vector<8x128xf32> -> vector<8x128xf32>
    %146 = arith.index_cast %142 : i32 to index
    %c0_70 = arith.constant 0 : index
    %147 = vector.load %arg9[%146, %c0_70] : memref<64x128xf32, #tpu.memory_space<vmem>>, vector<8x128xf32>
    %cst_71 = arith.constant 1.000000e-10 : f32
    %148 = vector.broadcast %cst_71 : f32 to vector<8x128xf32>
    %149 = arith.addf %145, %148 : vector<8x128xf32>
    %150 = math.sqrt %149 : vector<8x128xf32>
    %151 = arith.mulf %147, %150 : vector<8x128xf32>
    %152 = arith.addf %143, %151 : vector<8x128xf32>
    %153 = arith.index_cast %142 : i32 to index
    %c0_72 = arith.constant 0 : index
    %154 = vector.load %arg13[%153, %c0_72] : memref<64x128xf32, #tpu.memory_space<vmem>>, vector<8x128xf32>
    %155 = arith.addf %152, %154 : vector<8x128xf32>
    %156 = math.tanh %155 : vector<8x128xf32>
    %157 = arith.index_cast %142 : i32 to index
    %c0_73 = arith.constant 0 : index
    %158 = vector.load %arg12[%157, %c0_73] : memref<64x128xf32, #tpu.memory_space<vmem>>, vector<8x128xf32>
    tpu.vector_store %arg12[%157, %c0_73], %156 {strides = array<i32>} : memref<64x128xf32, #tpu.memory_space<vmem>>, vector<8x128xf32>,
    %c8_i32_74 = arith.constant 8 : i32
    %c0_75 = arith.constant 0 : index
    %c0_76 = arith.constant 0 : index
    %159 = vector.load %arg12[%c0_75, %c0_76] : memref<64x128xf32, #tpu.memory_space<vmem>>, vector<64x128xf32>
    %c0_77 = arith.constant 0 : index
    %c0_78 = arith.constant 0 : index
    %160 = vector.load %arg6[%c0_77, %c0_78] : memref<128x256xf32, #tpu.memory_space<vmem>>, vector<128x256xf32>
    %cst_79 = arith.constant dense<0.000000e+00> : vector<64x256xf32>
    %161 = tpu.matmul %159, %160, %cst_79 {dimension_numbers = #tpu.dot_dimension_numbers<[1], [0], [0], [1], [0, 0, 1, 1], [], []>} : vector<64x128xf32>, vector<128x256xf32>, vector<64x256xf32> -> vector<64x256xf32>
    %162 = arith.mulf %159, %159 : vector<64x128xf32>
    %c0_80 = arith.constant 0 : index
    %c0_81 = arith.constant 0 : index
    %163 = vector.load %arg7[%c0_80, %c0_81] : memref<128x256xf32, #tpu.memory_space<vmem>>, vector<128x256xf32>
    %cst_82 = arith.constant dense<0.000000e+00> : vector<64x256xf32>
    %164 = tpu.matmul %162, %163, %cst_82 {dimension_numbers = #tpu.dot_dimension_numbers<[1], [0], [0], [1], [0, 0, 1, 1], [], []>} : vector<64x128xf32>, vector<128x256xf32>, vector<64x256xf32> -> vector<64x256xf32>
    %c0_83 = arith.constant 0 : index
    %c0_84 = arith.constant 0 : index
    %165 = vector.load %arg10[%c0_83, %c0_84] : memref<64x256xf32, #tpu.memory_space<vmem>>, vector<64x256xf32>
    %cst_85 = arith.constant 1.000000e-10 : f32
    %166 = vector.broadcast %cst_85 : f32 to vector<64x256xf32>
    %167 = arith.addf %164, %166 : vector<64x256xf32>
    %168 = math.sqrt %167 : vector<64x256xf32>
    %169 = arith.mulf %165, %168 : vector<64x256xf32>
    %170 = arith.addf %161, %169 : vector<64x256xf32>
    %c0_86 = arith.constant 0 : index
    %c0_87 = arith.constant 0 : index
    %171 = vector.load %arg11[%c0_86, %c0_87] : memref<64x256xf32, #tpu.memory_space<vmem>>, vector<64x256xf32>
    tpu.vector_store %arg11[%c0_86, %c0_87], %170 {strides = array<i32>} : memref<64x256xf32, #tpu.memory_space<vmem>>, vector<64x256xf32>,
    return
  }
}

</mosaic_0001>

<llo_original>
// kernel: vanilla_rnn_sas_forward.1
$region0: #{vanilla_rnn_sas_forward.1}
  #allocation0 [shape = 'u32[]', space=smem, size = 0x4, offset = 0x4, fixed_abs, tag = 'smem constant byte address 0x4 - core index']
  #allocation1 [shape = 'u32[144,128]{1,0:T(1,128)}', space=vmem, size = 0x12000, scoped, tag = 'internal scratch']
  #allocation2 [shape = 'f32[64,128]{1,0:T(8,128)}', space=vmem, size = 0x8000, scoped, tag = 'scratch operand']
  %s0 = inlined_call_operand.vmem [shape: s32[64,1], index: 0, kind: input, shape index: {}]
  %s1 = inlined_call_operand.vmem [shape: f32[256,32], index: 1, kind: input, shape index: {}]
  %s2 = inlined_call_operand.vmem [shape: f32[32,128], index: 2, kind: input, shape index: {}]
  %s3 = inlined_call_operand.vmem [shape: f32[32,128], index: 3, kind: input, shape index: {}]
  %s4 = inlined_call_operand.vmem [shape: f32[128,128], index: 4, kind: input, shape index: {}]
  %s5 = inlined_call_operand.vmem [shape: f32[128,128], index: 5, kind: input, shape index: {}]
  %s6 = inlined_call_operand.vmem [shape: f32[128,256], index: 6, kind: input, shape index: {}]
  %s7 = inlined_call_operand.vmem [shape: f32[128,256], index: 7, kind: input, shape index: {}]
  %s8 = inlined_call_operand.vmem [shape: f32[64,128], index: 8, kind: input, shape index: {}]
  %s9 = inlined_call_operand.vmem [shape: f32[64,128], index: 9, kind: input, shape index: {}]
  %s10 = inlined_call_operand.vmem [shape: f32[64,256], index: 10, kind: input, shape index: {}]
  %s11 = inlined_call_operand.hbm [shape: f32[64,256], index: 11, kind: output, shape index: {0}]
  %s12 = inlined_call_operand.vmem [shape: f32[64,128], index: 12, kind: output, shape index: {1}]
  %13 = xla_tuple %s11, %s12
  %s14 = sld [smem:[#allocation0]]
  $region62: #{vanilla_rnn_sas_forward.1} parent=0
    _
  %s16 = ssub.s32 1, %s14
  %s17 = scalar_select 0, %s16, %s14
  $region1: #{vanilla_rnn_sas_forward.1} parent=0
    #allocation3 [shape = 'u8[65536]{0}', space=vmem, size = 0x10000, scoped, tag = 'output window, operand 0, single buffered']
    #allocation4 [shape = 's32[1]{0}', space=sflag, size = 0x4, scoped, tag = 'scoped memory for vanilla_rnn_sas_forward.1']
    %18 = vsyncpa [#allocation4], 0
    // Predicated region
    $region2: #{vanilla_rnn_sas_forward.1} parent=1 // pred_check
      _
    $region3: #{vanilla_rnn_sas_forward.1} parent=1 // pred_check_branch
      %20 = sbr.rel (0) target = $region5
    $region4: #{vanilla_rnn_sas_forward.1} parent=1 // pred_region
      _
    $region5: #{vanilla_rnn_sas_forward.1} parent=1 // pred_fallthru
      _
    // Predicated region
    $region6: #{vanilla_rnn_sas_forward.1} parent=1 // pred_check
      _
    $region7: #{vanilla_rnn_sas_forward.1} parent=1 // pred_check_branch
      %22 = sbr.rel (0) target = $region9
    $region8: #{vanilla_rnn_sas_forward.1} parent=1 // pred_region
      _
    $region9: #{vanilla_rnn_sas_forward.1} parent=1 // pred_fallthru
      _
    // Predicated region
    $region10: #{vanilla_rnn_sas_forward.1} parent=1 // pred_check
      _
    $region11: #{vanilla_rnn_sas_forward.1} parent=1 // pred_check_branch
      %24 = sbr.rel (0) target = $region13
    $region12: #{vanilla_rnn_sas_forward.1} parent=1 // pred_region
      _
    $region13: #{vanilla_rnn_sas_forward.1} parent=1 // pred_fallthru
      _
    // Predicated region
    $region14: #{vanilla_rnn_sas_forward.1} parent=1 // pred_check
      _
    $region15: #{vanilla_rnn_sas_forward.1} parent=1 // pred_check_branch
      %26 = sbr.rel (0) target = $region17
    $region16: #{vanilla_rnn_sas_forward.1} parent=1 // pred_region
      _
    $region17: #{vanilla_rnn_sas_forward.1} parent=1 // pred_fallthru
      _
    // Predicated region
    $region18: #{vanilla_rnn_sas_forward.1} parent=1 // pred_check
      _
    $region19: #{vanilla_rnn_sas_forward.1} parent=1 // pred_check_branch
      %28 = sbr.rel (0) target = $region21
    $region20: #{vanilla_rnn_sas_forward.1} parent=1 // pred_region
      _
    $region21: #{vanilla_rnn_sas_forward.1} parent=1 // pred_fallthru
      _
    // Predicated region
    $region22: #{vanilla_rnn_sas_forward.1} parent=1 // pred_check
      _
    $region23: #{vanilla_rnn_sas_forward.1} parent=1 // pred_check_branch
      %30 = sbr.rel (0) target = $region25
    $region24: #{vanilla_rnn_sas_forward.1} parent=1 // pred_region
      _
    $region25: #{vanilla_rnn_sas_forward.1} parent=1 // pred_fallthru
      _
    // Predicated region
    $region26: #{vanilla_rnn_sas_forward.1} parent=1 // pred_check
      _
    $region27: #{vanilla_rnn_sas_forward.1} parent=1 // pred_check_branch
      %32 = sbr.rel (0) target = $region29
    $region28: #{vanilla_rnn_sas_forward.1} parent=1 // pred_region
      _
    $region29: #{vanilla_rnn_sas_forward.1} parent=1 // pred_fallthru
      _
    // Predicated region
    $region30: #{vanilla_rnn_sas_forward.1} parent=1 // pred_check
      _
    $region31: #{vanilla_rnn_sas_forward.1} parent=1 // pred_check_branch
      %34 = sbr.rel (0) target = $region33
    $region32: #{vanilla_rnn_sas_forward.1} parent=1 // pred_region
      _
    $region33: #{vanilla_rnn_sas_forward.1} parent=1 // pred_fallthru
      _
    // Predicated region
    $region34: #{vanilla_rnn_sas_forward.1} parent=1 // pred_check
      _
    $region35: #{vanilla_rnn_sas_forward.1} parent=1 // pred_check_branch
      %36 = sbr.rel (0) target = $region37
    $region36: #{vanilla_rnn_sas_forward.1} parent=1 // pred_region
      _
    $region37: #{vanilla_rnn_sas_forward.1} parent=1 // pred_fallthru
      _
    // Predicated region
    $region38: #{vanilla_rnn_sas_forward.1} parent=1 // pred_check
      _
    $region39: #{vanilla_rnn_sas_forward.1} parent=1 // pred_check_branch
      %38 = sbr.rel (0) target = $region41
    $region40: #{vanilla_rnn_sas_forward.1} parent=1 // pred_region
      _
    $region41: #{vanilla_rnn_sas_forward.1} parent=1 // pred_fallthru
      _
    // Predicated region
    $region42: #{vanilla_rnn_sas_forward.1} parent=1 // pred_check
      _
    $region43: #{vanilla_rnn_sas_forward.1} parent=1 // pred_check_branch
      %40 = sbr.rel (0) target = $region45
    $region44: #{vanilla_rnn_sas_forward.1} parent=1 // pred_region
      _
    $region45: #{vanilla_rnn_sas_forward.1} parent=1 // pred_fallthru
      _
    %v41 = vld [vmem:[%s0] sm:$0xff]
    %v42 = vld [vmem:[%s0 + $0x8] sm:$0xff]
    %v43 = vld [vmem:[%s0 + $0x10] sm:$0xff]
    %v44 = vld [vmem:[%s0 + $0x18] sm:$0xff]
    %v45 = vld [vmem:[%s0 + $0x20] sm:$0xff]
    %v46 = vld [vmem:[%s0 + $0x28] sm:$0xff]
    %v47 = vld [vmem:[%s0 + $0x30] sm:$0xff]
    %v48 = vld [vmem:[%s0 + $0x38] sm:$0xff]
    %v49 = vlaneseq
    %v50 = vand.u32 %v49, 127
    %v51 = vadd.s32 %v50, 128
    %52 = vset.pattern.permute.xlu0 0
    %53 = vperm.xlu0 %52, %v41
    %v54 = vpop.permute.xlu0 %53
    %55 = vset.pattern.permute.xlu0 0
    %56 = vperm.xlu0 %55, %v42
    %v57 = vpop.permute.xlu0 %56
    %58 = vset.pattern.permute.xlu0 0
    %59 = vperm.xlu0 %58, %v43
    %v60 = vpop.permute.xlu0 %59
    %61 = vset.pattern.permute.xlu0 0
    %62 = vperm.xlu0 %61, %v44
    %v63 = vpop.permute.xlu0 %62
    %64 = vset.pattern.permute.xlu0 0
    %65 = vperm.xlu0 %64, %v45
    %v66 = vpop.permute.xlu0 %65
    %67 = vset.pattern.permute.xlu0 0
    %68 = vperm.xlu0 %67, %v46
    %v69 = vpop.permute.xlu0 %68
    %70 = vset.pattern.permute.xlu0 0
    %71 = vperm.xlu0 %70, %v47
    %v72 = vpop.permute.xlu0 %71
    %73 = vset.pattern.permute.xlu0 0
    %74 = vperm.xlu0 %73, %v48
    %v75 = vpop.permute.xlu0 %74
    %vm76 = vcmp.eq.s32.totalorder %v50, %v54
    %vm77 = vcmp.eq.s32.totalorder %v51, %v54
    %vm78 = vcmp.eq.s32.totalorder %v50, %v57
    %vm79 = vcmp.eq.s32.totalorder %v51, %v57
    %vm80 = vcmp.eq.s32.totalorder %v50, %v60
    %vm81 = vcmp.eq.s32.totalorder %v51, %v60
    %vm82 = vcmp.eq.s32.totalorder %v50, %v63
    %vm83 = vcmp.eq.s32.totalorder %v51, %v63
    %vm84 = vcmp.eq.s32.totalorder %v50, %v66
    %vm85 = vcmp.eq.s32.totalorder %v51, %v66
    %vm86 = vcmp.eq.s32.totalorder %v50, %v69
    %vm87 = vcmp.eq.s32.totalorder %v51, %v69
    %vm88 = vcmp.eq.s32.totalorder %v50, %v72
    %vm89 = vcmp.eq.s32.totalorder %v51, %v72
    %vm90 = vcmp.eq.s32.totalorder %v50, %v75
    %vm91 = vcmp.eq.s32.totalorder %v51, %v75
    %v92 = vsel %vm76, 1, 0
    %v93 = vsel %vm77, 1, 0
    %v94 = vsel %vm78, 1, 0
    %v95 = vsel %vm79, 1, 0
    %v96 = vsel %vm80, 1, 0
    %v97 = vsel %vm81, 1, 0
    %v98 = vsel %vm82, 1, 0
    %v99 = vsel %vm83, 1, 0
    %v100 = vsel %vm84, 1, 0
    %v101 = vsel %vm85, 1, 0
    %v102 = vsel %vm86, 1, 0
    %v103 = vsel %vm87, 1, 0
    %v104 = vsel %vm88, 1, 0
    %v105 = vsel %vm89, 1, 0
    %v106 = vsel %vm90, 1, 0
    %v107 = vsel %vm91, 1, 0
    %v108 = vcvt.s32.f32 %v92
    %v109 = vcvt.s32.f32 %v93
    %v110 = vcvt.s32.f32 %v94
    %v111 = vcvt.s32.f32 %v95
    %v112 = vcvt.s32.f32 %v96
    %v113 = vcvt.s32.f32 %v97
    %v114 = vcvt.s32.f32 %v98
    %v115 = vcvt.s32.f32 %v99
    %v116 = vcvt.s32.f32 %v100
    %v117 = vcvt.s32.f32 %v101
    %v118 = vcvt.s32.f32 %v102
    %v119 = vcvt.s32.f32 %v103
    %v120 = vcvt.s32.f32 %v104
    %v121 = vcvt.s32.f32 %v105
    %v122 = vcvt.s32.f32 %v106
    %v123 = vcvt.s32.f32 %v107
    %v124 = vld [vmem:[%s1] sm:$0xff]
    %v125 = vld [vmem:[%s1 + $0x8] sm:$0xff]
    %v126 = vld [vmem:[%s1 + $0x10] sm:$0xff]
    %v127 = vld [vmem:[%s1 + $0x18] sm:$0xff]
    %v128 = vld [vmem:[%s1 + $0x20] sm:$0xff]
    %v129 = vld [vmem:[%s1 + $0x28] sm:$0xff]
    %v130 = vld [vmem:[%s1 + $0x30] sm:$0xff]
    %v131 = vld [vmem:[%s1 + $0x38] sm:$0xff]
    %v132 = vld [vmem:[%s1 + $0x40] sm:$0xff]
    %v133 = vld [vmem:[%s1 + $0x48] sm:$0xff]
    %v134 = vld [vmem:[%s1 + $0x50] sm:$0xff]
    %v135 = vld [vmem:[%s1 + $0x58] sm:$0xff]
    %v136 = vld [vmem:[%s1 + $0x60] sm:$0xff]
    %v137 = vld [vmem:[%s1 + $0x68] sm:$0xff]
    %v138 = vld [vmem:[%s1 + $0x70] sm:$0xff]
    %v139 = vld [vmem:[%s1 + $0x78] sm:$0xff]
    %v140 = vld [vmem:[%s1 + $0x80] sm:$0xff]
    %v141 = vld [vmem:[%s1 + $0x88] sm:$0xff]
    %v142 = vld [vmem:[%s1 + $0x90] sm:$0xff]
    %v143 = vld [vmem:[%s1 + $0x98] sm:$0xff]
    %v144 = vld [vmem:[%s1 + $0xa0] sm:$0xff]
    %v145 = vld [vmem:[%s1 + $0xa8] sm:$0xff]
    %v146 = vld [vmem:[%s1 + $0xb0] sm:$0xff]
    %v147 = vld [vmem:[%s1 + $0xb8] sm:$0xff]
    %v148 = vld [vmem:[%s1 + $0xc0] sm:$0xff]
    %v149 = vld [vmem:[%s1 + $0xc8] sm:$0xff]
    %v150 = vld [vmem:[%s1 + $0xd0] sm:$0xff]
    %v151 = vld [vmem:[%s1 + $0xd8] sm:$0xff]
    %v152 = vld [vmem:[%s1 + $0xe0] sm:$0xff]
    %v153 = vld [vmem:[%s1 + $0xe8] sm:$0xff]
    %v154 = vld [vmem:[%s1 + $0xf0] sm:$0xff]
    %v155 = vld [vmem:[%s1 + $0xf8] sm:$0xff]
    %156 = vmatprep.subr.mxu0 0.0
    %157 = vmatpush1.msra.mxu0 %v139
    %158 = vmatprep.subr.mxu0 0.0
    %159 = vmatpush1.msra.mxu0 %v138
    %160 = vmatprep.subr.mxu0 0.0
    %161 = vmatpush1.msra.mxu0 %v137
    %162 = vmatprep.subr.mxu0 0.0
    %163 = vmatpush1.msra.mxu0 %v136
    %164 = vmatprep.subr.mxu0 0.0
    %165 = vmatpush1.msra.mxu0 %v135
    %166 = vmatprep.subr.mxu0 0.0
    %167 = vmatpush1.msra.mxu0 %v134
    %168 = vmatprep.subr.mxu0 0.0
    %169 = vmatpush1.msra.mxu0 %v133
    %170 = vmatprep.subr.mxu0 0.0
    %171 = vmatpush1.msra.mxu0 %v132
    %172 = vmatprep.subr.mxu0 0.0
    %173 = vmatpush1.msra.mxu0 %v131
    %174 = vmatprep.subr.mxu0 0.0
    %175 = vmatpush1.msra.mxu0 %v130
    %176 = vmatprep.subr.mxu0 0.0
    %177 = vmatpush1.msra.mxu0 %v129
    %178 = vmatprep.subr.mxu0 0.0
    %179 = vmatpush1.msra.mxu0 %v128
    %180 = vmatprep.subr.mxu0 0.0
    %181 = vmatpush1.msra.mxu0 %v127
    %182 = vmatprep.subr.mxu0 0.0
    %183 = vmatpush1.msra.mxu0 %v126
    %184 = vmatprep.subr.mxu0 0.0
    %185 = vmatpush1.msra.mxu0 %v125
    %186 = vmatprep.subr.mxu0 0.0
    %187 = vmatpush1.msra.mxu0 %v124
    %188 = vmatprep.subr.mxu0 0.0
    %189 = vmatpush2.msra.mxu0 %v155
    %190 = vmatprep.subr.mxu0 0.0
    %191 = vmatpush2.msra.mxu0 %v154
    %192 = vmatprep.subr.mxu0 0.0
    %193 = vmatpush2.msra.mxu0 %v153
    %194 = vmatprep.subr.mxu0 0.0
    %195 = vmatpush2.msra.mxu0 %v152
    %196 = vmatprep.subr.mxu0 0.0
    %197 = vmatpush2.msra.mxu0 %v151
    %198 = vmatprep.subr.mxu0 0.0
    %199 = vmatpush2.msra.mxu0 %v150
    %200 = vmatprep.subr.mxu0 0.0
    %201 = vmatpush2.msra.mxu0 %v149
    %202 = vmatprep.subr.mxu0 0.0
    %203 = vmatpush2.msra.mxu0 %v148
    %204 = vmatprep.subr.mxu0 0.0
    %205 = vmatpush2.msra.mxu0 %v147
    %206 = vmatprep.subr.mxu0 0.0
    %207 = vmatpush2.msra.mxu0 %v146
    %208 = vmatprep.subr.mxu0 0.0
    %209 = vmatpush2.msra.mxu0 %v145
    %210 = vmatprep.subr.mxu0 0.0
    %211 = vmatpush2.msra.mxu0 %v144
    %212 = vmatprep.subr.mxu0 0.0
    %213 = vmatpush2.msra.mxu0 %v143
    %214 = vmatprep.subr.mxu0 0.0
    %215 = vmatpush2.msra.mxu0 %v142
    %216 = vmatprep.subr.mxu0 0.0
    %217 = vmatpush2.msra.mxu0 %v141
    %218 = vmatprep.subr.mxu0 0.0
    %219 = vmatpush2.msra.mxu0 %v140
    %220 = vmatprep.mubr.f32.mxu0 %v109
    %221 = vmatmul.mubr.f32.gmra.mxu0 %v108
    %v222 = vpop.f32.mrf.mxu0
    %v223 = vadd.f32 0.0, %v222
    %v224 = vpop.f32.mrf.mxu0
    %225 = vmatprep.mubr.f32.mxu0 %v111
    %226 = vmatmul.mubr.f32.gmra.mxu0 %v110
    %v227 = vpop.f32.mrf.mxu0
    %v228 = vadd.f32 0.0, %v227
    %v229 = vpop.f32.mrf.mxu0
    %230 = vmatprep.mubr.f32.mxu0 %v113
    %231 = vmatmul.mubr.f32.gmra.mxu0 %v112
    %v232 = vpop.f32.mrf.mxu0
    %v233 = vadd.f32 0.0, %v232
    %v234 = vpop.f32.mrf.mxu0
    %235 = vmatprep.mubr.f32.mxu0 %v115
    %236 = vmatmul.mubr.f32.gmra.mxu0 %v114
    %v237 = vpop.f32.mrf.mxu0
    %v238 = vadd.f32 0.0, %v237
    %v239 = vpop.f32.mrf.mxu0
    %240 = vmatprep.mubr.f32.mxu0 %v117
    %241 = vmatmul.mubr.f32.gmra.mxu0 %v116
    %v242 = vpop.f32.mrf.mxu0
    %v243 = vadd.f32 0.0, %v242
    %v244 = vpop.f32.mrf.mxu0
    %245 = vmatprep.mubr.f32.mxu0 %v119
    %246 = vmatmul.mubr.f32.gmra.mxu0 %v118
    %v247 = vpop.f32.mrf.mxu0
    %v248 = vadd.f32 0.0, %v247
    %v249 = vpop.f32.mrf.mxu0
    %250 = vmatprep.mubr.f32.mxu0 %v121
    %251 = vmatmul.mubr.f32.gmra.mxu0 %v120
    %v252 = vpop.f32.mrf.mxu0
    %v253 = vadd.f32 0.0, %v252
    %v254 = vpop.f32.mrf.mxu0
    %255 = vmatprep.mubr.f32.mxu0 %v123
    %256 = vmatmul.mubr.f32.gmra.mxu0 %v122
    %v257 = vpop.f32.mrf.mxu0
    %v258 = vadd.f32 0.0, %v257
    %v259 = vpop.f32.mrf.mxu0
    %260 = vdwg.mxu0
    %v261 = vld [vmem:[%s2] sm:$0xff]
    %v262 = vld [vmem:[%s2 + $0x8] sm:$0xff]
    %v263 = vld [vmem:[%s2 + $0x10] sm:$0xff]
    %v264 = vld [vmem:[%s2 + $0x18] sm:$0xff]
    %v265 = vmul.f32 %v223, %v223
    %v266 = vmul.f32 %v228, %v228
    %v267 = vmul.f32 %v233, %v233
    %v268 = vmul.f32 %v238, %v238
    %v269 = vmul.f32 %v243, %v243
    %v270 = vmul.f32 %v248, %v248
    %v271 = vmul.f32 %v253, %v253
    %v272 = vmul.f32 %v258, %v258
    %v273 = vld [vmem:[%s3] sm:$0xff]
    %v274 = vld [vmem:[%s3 + $0x8] sm:$0xff]
    %v275 = vld [vmem:[%s3 + $0x10] sm:$0xff]
    %v276 = vld [vmem:[%s3 + $0x18] sm:$0xff]
    %v277 = vld [vmem:[%s8] sm:$0xff]
    %v278 = vld [vmem:[%s8 + $0x8] sm:$0xff]
    %v279 = vld [vmem:[%s8 + $0x10] sm:$0xff]
    %v280 = vld [vmem:[%s8 + $0x18] sm:$0xff]
    %v281 = vld [vmem:[%s8 + $0x20] sm:$0xff]
    %v282 = vld [vmem:[%s8 + $0x28] sm:$0xff]
    %v283 = vld [vmem:[%s8 + $0x30] sm:$0xff]
    %v284 = vld [vmem:[%s8 + $0x38] sm:$0xff]
    %vm285 = vcmask 261120
    %v287 = vsel %vm285, %v265, 0
    %v290 = vsel %vm285, %v266, 0
    %v293 = vsel %vm285, %v267, 0
    %v296 = vsel %vm285, %v268, 0
    %v299 = vsel %vm285, %v269, 0
    %v302 = vsel %vm285, %v270, 0
    %v305 = vsel %vm285, %v271, 0
    %v308 = vsel %vm285, %v272, 0
    %310 = vmatprep.subr.mxu0 0.0
    %311 = vmatpush1.msra.mxu0 0.0
    %312 = vmatprep.subr.mxu0 0.0
    %313 = vmatpush1.msra.mxu0 0.0
    %314 = vmatprep.subr.mxu0 0.0
    %315 = vmatpush1.msra.mxu0 0.0
    %316 = vmatprep.subr.mxu0 0.0
    %317 = vmatpush1.msra.mxu0 0.0
    %318 = vmatprep.subr.mxu0 0.0
    %319 = vmatpush1.msra.mxu0 0.0
    %320 = vmatprep.subr.mxu0 0.0
    %321 = vmatpush1.msra.mxu0 0.0
    %322 = vmatprep.subr.mxu0 0.0
    %323 = vmatpush1.msra.mxu0 0.0
    %324 = vmatprep.subr.mxu0 0.0
    %325 = vmatpush1.msra.mxu0 0.0
    %326 = vmatprep.subr.mxu0 0.0
    %327 = vmatpush1.msra.mxu0 0.0
    %328 = vmatprep.subr.mxu0 0.0
    %329 = vmatpush1.msra.mxu0 0.0
    %330 = vmatprep.subr.mxu0 0.0
    %331 = vmatpush1.msra.mxu0 0.0
    %332 = vmatprep.subr.mxu0 0.0
    %333 = vmatpush1.msra.mxu0 0.0
    %334 = vmatprep.subr.mxu0 0.0
    %335 = vmatpush1.msra.mxu0 %v276
    %336 = vmatprep.subr.mxu0 0.0
    %337 = vmatpush1.msra.mxu0 %v275
    %338 = vmatprep.subr.mxu0 0.0
    %339 = vmatpush1.msra.mxu0 %v274
    %340 = vmatprep.subr.mxu0 0.0
    %341 = vmatpush1.msra.mxu0 %v273
    %342 = vmatprep.subr.mxu0 0.0
    %343 = vmatpush2.msra.mxu0 0.0
    %344 = vmatprep.subr.mxu0 0.0
    %345 = vmatpush2.msra.mxu0 0.0
    %346 = vmatprep.subr.mxu0 0.0
    %347 = vmatpush2.msra.mxu0 0.0
    %348 = vmatprep.subr.mxu0 0.0
    %349 = vmatpush2.msra.mxu0 0.0
    %350 = vmatprep.subr.mxu0 0.0
    %351 = vmatpush2.msra.mxu0 0.0
    %352 = vmatprep.subr.mxu0 0.0
    %353 = vmatpush2.msra.mxu0 0.0
    %354 = vmatprep.subr.mxu0 0.0
    %355 = vmatpush2.msra.mxu0 0.0
    %356 = vmatprep.subr.mxu0 0.0
    %357 = vmatpush2.msra.mxu0 0.0
    %358 = vmatprep.subr.mxu0 0.0
    %359 = vmatpush2.msra.mxu0 0.0
    %360 = vmatprep.subr.mxu0 0.0
    %361 = vmatpush2.msra.mxu0 0.0
    %362 = vmatprep.subr.mxu0 0.0
    %363 = vmatpush2.msra.mxu0 0.0
    %364 = vmatprep.subr.mxu0 0.0
    %365 = vmatpush2.msra.mxu0 0.0
    %366 = vmatprep.subr.mxu0 0.0
    %367 = vmatpush2.msra.mxu0 0.0
    %368 = vmatprep.subr.mxu0 0.0
    %369 = vmatpush2.msra.mxu0 0.0
    %370 = vmatprep.subr.mxu0 0.0
    %371 = vmatpush2.msra.mxu0 0.0
    %372 = vmatprep.subr.mxu0 0.0
    %373 = vmatpush2.msra.mxu0 0.0
    %374 = vmatprep.mubr.f32.mxu0 0.0
    %375 = vmatmul.mubr.f32.gmra.mxu0 %v287
    %v376 = vpop.f32.mrf.mxu0
    %v377 = vadd.f32 1e-10, %v376
    %v378 = vpop.f32.mrf.mxu0
    %379 = vmatprep.mubr.f32.mxu0 0.0
    %380 = vmatmul.mubr.f32.gmra.mxu0 %v290
    %v381 = vpop.f32.mrf.mxu0
    %v382 = vadd.f32 1e-10, %v381
    %v383 = vpop.f32.mrf.mxu0
    %384 = vmatprep.mubr.f32.mxu0 0.0
    %385 = vmatmul.mubr.f32.gmra.mxu0 %v293
    %v386 = vpop.f32.mrf.mxu0
    %v387 = vadd.f32 1e-10, %v386
    %v388 = vpop.f32.mrf.mxu0
    %389 = vmatprep.mubr.f32.mxu0 0.0
    %390 = vmatmul.mubr.f32.gmra.mxu0 %v296
    %v391 = vpop.f32.mrf.mxu0
    %v392 = vadd.f32 1e-10, %v391
    %v393 = vpop.f32.mrf.mxu0
    %394 = vmatprep.mubr.f32.mxu0 0.0
    %395 = vmatmul.mubr.f32.gmra.mxu0 %v299
    %v396 = vpop.f32.mrf.mxu0
    %v397 = vadd.f32 1e-10, %v396
    %v398 = vpop.f32.mrf.mxu0
    %399 = vmatprep.mubr.f32.mxu0 0.0
    %400 = vmatmul.mubr.f32.gmra.mxu0 %v302
    %v401 = vpop.f32.mrf.mxu0
    %v402 = vadd.f32 1e-10, %v401
    %v403 = vpop.f32.mrf.mxu0
    %404 = vmatprep.mubr.f32.mxu0 0.0
    %405 = vmatmul.mubr.f32.gmra.mxu0 %v305
    %v406 = vpop.f32.mrf.mxu0
    %v407 = vadd.f32 1e-10, %v406
    %v408 = vpop.f32.mrf.mxu0
    %409 = vmatprep.mubr.f32.mxu0 0.0
    %410 = vmatmul.mubr.f32.gmra.mxu0 %v308
    %v411 = vpop.f32.mrf.mxu0
    %v412 = vadd.f32 1e-10, %v411
    %v413 = vpop.f32.mrf.mxu0
    %414 = vdwg.mxu0
    %v415 = vrsqrt.pop %v377
    %v416 = vmul.f32 %v377, %v415
    %vm417 = vcmp.eq.f32.partialorder %v377, inf
    %v418 = vsel %vm417, %v377, %v416
    %vm419 = vcmp.eq.f32.partialorder %v377, 0.0
    %v420 = vand.u32 %v377, 2147483648
    %v421 = vsel %vm419, %v420, %v418
    %v422 = vrsqrt.pop %v382
    %v423 = vmul.f32 %v382, %v422
    %vm424 = vcmp.eq.f32.partialorder %v382, inf
    %v425 = vsel %vm424, %v382, %v423
    %vm426 = vcmp.eq.f32.partialorder %v382, 0.0
    %v427 = vand.u32 %v382, 2147483648
    %v428 = vsel %vm426, %v427, %v425
    %v429 = vrsqrt.pop %v387
    %v430 = vmul.f32 %v387, %v429
    %vm431 = vcmp.eq.f32.partialorder %v387, inf
    %v432 = vsel %vm431, %v387, %v430
    %vm433 = vcmp.eq.f32.partialorder %v387, 0.0
    %v434 = vand.u32 %v387, 2147483648
    %v435 = vsel %vm433, %v434, %v432
    %v436 = vrsqrt.pop %v392
    %v437 = vmul.f32 %v392, %v436
    %vm438 = vcmp.eq.f32.partialorder %v392, inf
    %v439 = vsel %vm438, %v392, %v437
    %vm440 = vcmp.eq.f32.partialorder %v392, 0.0
    %v441 = vand.u32 %v392, 2147483648
    %v442 = vsel %vm440, %v441, %v439
    %v443 = vrsqrt.pop %v397
    %v444 = vmul.f32 %v397, %v443
    %vm445 = vcmp.eq.f32.partialorder %v397, inf
    %v446 = vsel %vm445, %v397, %v444
    %vm447 = vcmp.eq.f32.partialorder %v397, 0.0
    %v448 = vand.u32 %v397, 2147483648
    %v449 = vsel %vm447, %v448, %v446
    %v450 = vrsqrt.pop %v402
    %v451 = vmul.f32 %v402, %v450
    %vm452 = vcmp.eq.f32.partialorder %v402, inf
    %v453 = vsel %vm452, %v402, %v451
    %vm454 = vcmp.eq.f32.partialorder %v402, 0.0
    %v455 = vand.u32 %v402, 2147483648
    %v456 = vsel %vm454, %v455, %v453
    %v457 = vrsqrt.pop %v407
    %v458 = vmul.f32 %v407, %v457
    %vm459 = vcmp.eq.f32.partialorder %v407, inf
    %v460 = vsel %vm459, %v407, %v458
    %vm461 = vcmp.eq.f32.partialorder %v407, 0.0
    %v462 = vand.u32 %v407, 2147483648
    %v463 = vsel %vm461, %v462, %v460
    %v464 = vrsqrt.pop %v412
    %v465 = vmul.f32 %v412, %v464
    %vm466 = vcmp.eq.f32.partialorder %v412, inf
    %v467 = vsel %vm466, %v412, %v465
    %vm468 = vcmp.eq.f32.partialorder %v412, 0.0
    %v469 = vand.u32 %v412, 2147483648
    %v470 = vsel %vm468, %v469, %v467
    %v471 = vmul.f32 %v277, %v421
    %v472 = vmul.f32 %v278, %v428
    %v473 = vmul.f32 %v279, %v435
    %v474 = vmul.f32 %v280, %v442
    %v475 = vmul.f32 %v281, %v449
    %v476 = vmul.f32 %v282, %v456
    %v477 = vmul.f32 %v283, %v463
    %v478 = vmul.f32 %v284, %v470
    %v480 = vsel %vm285, %v223, 0
    %v483 = vsel %vm285, %v228, 0
    %v486 = vsel %vm285, %v233, 0
    %v489 = vsel %vm285, %v238, 0
    %v492 = vsel %vm285, %v243, 0
    %v495 = vsel %vm285, %v248, 0
    %v498 = vsel %vm285, %v253, 0
    %v501 = vsel %vm285, %v258, 0
    %503 = vmatprep.subr.mxu0 0.0
    %504 = vmatpush1.msra.mxu0 0.0
    %505 = vmatprep.subr.mxu0 0.0
    %506 = vmatpush1.msra.mxu0 0.0
    %507 = vmatprep.subr.mxu0 0.0
    %508 = vmatpush1.msra.mxu0 0.0
    %509 = vmatprep.subr.mxu0 0.0
    %510 = vmatpush1.msra.mxu0 0.0
    %511 = vmatprep.subr.mxu0 0.0
    %512 = vmatpush1.msra.mxu0 0.0
    %513 = vmatprep.subr.mxu0 0.0
    %514 = vmatpush1.msra.mxu0 0.0
    %515 = vmatprep.subr.mxu0 0.0
    %516 = vmatpush1.msra.mxu0 0.0
    %517 = vmatprep.subr.mxu0 0.0
    %518 = vmatpush1.msra.mxu0 0.0
    %519 = vmatprep.subr.mxu0 0.0
    %520 = vmatpush1.msra.mxu0 0.0
    %521 = vmatprep.subr.mxu0 0.0
    %522 = vmatpush1.msra.mxu0 0.0
    %523 = vmatprep.subr.mxu0 0.0
    %524 = vmatpush1.msra.mxu0 0.0
    %525 = vmatprep.subr.mxu0 0.0
    %526 = vmatpush1.msra.mxu0 0.0
    %527 = vmatprep.subr.mxu0 0.0
    %528 = vmatpush1.msra.mxu0 %v264
    %529 = vmatprep.subr.mxu0 0.0
    %530 = vmatpush1.msra.mxu0 %v263
    %531 = vmatprep.subr.mxu0 0.0
    %532 = vmatpush1.msra.mxu0 %v262
    %533 = vmatprep.subr.mxu0 0.0
    %534 = vmatpush1.msra.mxu0 %v261
    %535 = vmatprep.subr.mxu0 0.0
    %536 = vmatpush2.msra.mxu0 0.0
    %537 = vmatprep.subr.mxu0 0.0
    %538 = vmatpush2.msra.mxu0 0.0
    %539 = vmatprep.subr.mxu0 0.0
    %540 = vmatpush2.msra.mxu0 0.0
    %541 = vmatprep.subr.mxu0 0.0
    %542 = vmatpush2.msra.mxu0 0.0
    %543 = vmatprep.subr.mxu0 0.0
    %544 = vmatpush2.msra.mxu0 0.0
    %545 = vmatprep.subr.mxu0 0.0
    %546 = vmatpush2.msra.mxu0 0.0
    %547 = vmatprep.subr.mxu0 0.0
    %548 = vmatpush2.msra.mxu0 0.0
    %549 = vmatprep.subr.mxu0 0.0
    %550 = vmatpush2.msra.mxu0 0.0
    %551 = vmatprep.subr.mxu0 0.0
    %552 = vmatpush2.msra.mxu0 0.0
    %553 = vmatprep.subr.mxu0 0.0
    %554 = vmatpush2.msra.mxu0 0.0
    %555 = vmatprep.subr.mxu0 0.0
    %556 = vmatpush2.msra.mxu0 0.0
    %557 = vmatprep.subr.mxu0 0.0
    %558 = vmatpush2.msra.mxu0 0.0
    %559 = vmatprep.subr.mxu0 0.0
    %560 = vmatpush2.msra.mxu0 0.0
    %561 = vmatprep.subr.mxu0 0.0
    %562 = vmatpush2.msra.mxu0 0.0
    %563 = vmatprep.subr.mxu0 0.0
    %564 = vmatpush2.msra.mxu0 0.0
    %565 = vmatprep.subr.mxu0 0.0
    %566 = vmatpush2.msra.mxu0 0.0
    %567 = vmatprep.mubr.f32.mxu0 0.0
    %568 = vmatmul.mubr.f32.gmra.mxu0 %v480
    %v569 = vpop.f32.mrf.mxu0
    %v570 = vadd.f32 %v471, %v569
    %v571 = vpop.f32.mrf.mxu0
    %572 = vmatprep.mubr.f32.mxu0 0.0
    %573 = vmatmul.mubr.f32.gmra.mxu0 %v483
    %v574 = vpop.f32.mrf.mxu0
    %v575 = vadd.f32 %v472, %v574
    %v576 = vpop.f32.mrf.mxu0
    %577 = vmatprep.mubr.f32.mxu0 0.0
    %578 = vmatmul.mubr.f32.gmra.mxu0 %v486
    %v579 = vpop.f32.mrf.mxu0
    %v580 = vadd.f32 %v473, %v579
    %v581 = vpop.f32.mrf.mxu0
    %582 = vmatprep.mubr.f32.mxu0 0.0
    %583 = vmatmul.mubr.f32.gmra.mxu0 %v489
    %v584 = vpop.f32.mrf.mxu0
    %v585 = vadd.f32 %v474, %v584
    %v586 = vpop.f32.mrf.mxu0
    %587 = vmatprep.mubr.f32.mxu0 0.0
    %588 = vmatmul.mubr.f32.gmra.mxu0 %v492
    %v589 = vpop.f32.mrf.mxu0
    %v590 = vadd.f32 %v475, %v589
    %v591 = vpop.f32.mrf.mxu0
    %592 = vmatprep.mubr.f32.mxu0 0.0
    %593 = vmatmul.mubr.f32.gmra.mxu0 %v495
    %v594 = vpop.f32.mrf.mxu0
    %v595 = vadd.f32 %v476, %v594
    %v596 = vpop.f32.mrf.mxu0
    %597 = vmatprep.mubr.f32.mxu0 0.0
    %598 = vmatmul.mubr.f32.gmra.mxu0 %v498
    %v599 = vpop.f32.mrf.mxu0
    %v600 = vadd.f32 %v477, %v599
    %v601 = vpop.f32.mrf.mxu0
    %602 = vmatprep.mubr.f32.mxu0 0.0
    %603 = vmatmul.mubr.f32.gmra.mxu0 %v501
    %v604 = vpop.f32.mrf.mxu0
    %v605 = vadd.f32 %v478, %v604
    %v606 = vpop.f32.mrf.mxu0
    %607 = vdwg.mxu0
    %608 = vst [vmem:[#allocation2] sm:$0xff] %v570
    %609 = vst [vmem:[#allocation2 + $0x8] sm:$0xff] %v575
    %610 = vst [vmem:[#allocation2 + $0x10] sm:$0xff] %v580
    %611 = vst [vmem:[#allocation2 + $0x18] sm:$0xff] %v585
    %612 = vst [vmem:[#allocation2 + $0x20] sm:$0xff] %v590
    %613 = vst [vmem:[#allocation2 + $0x28] sm:$0xff] %v595
    %614 = vst [vmem:[#allocation2 + $0x30] sm:$0xff] %v600
    %615 = vst [vmem:[#allocation2 + $0x38] sm:$0xff] %v605
    %v616 = vld [vmem:[%s4] sm:$0xff]
    %v617 = vld [vmem:[%s4 + $0x8] sm:$0xff]
    %v618 = vld [vmem:[%s4 + $0x10] sm:$0xff]
    %v619 = vld [vmem:[%s4 + $0x18] sm:$0xff]
    %v620 = vld [vmem:[%s4 + $0x20] sm:$0xff]
    %v621 = vld [vmem:[%s4 + $0x28] sm:$0xff]
    %v622 = vld [vmem:[%s4 + $0x30] sm:$0xff]
    %v623 = vld [vmem:[%s4 + $0x38] sm:$0xff]
    %v624 = vld [vmem:[%s4 + $0x40] sm:$0xff]
    %v625 = vld [vmem:[%s4 + $0x48] sm:$0xff]
    %v626 = vld [vmem:[%s4 + $0x50] sm:$0xff]
    %v627 = vld [vmem:[%s4 + $0x58] sm:$0xff]
    %v628 = vld [vmem:[%s4 + $0x60] sm:$0xff]
    %v629 = vld [vmem:[%s4 + $0x68] sm:$0xff]
    %v630 = vld [vmem:[%s4 + $0x70] sm:$0xff]
    %v631 = vld [vmem:[%s4 + $0x78] sm:$0xff]
    %v632 = vld [vmem:[%s5] sm:$0xff]
    %v633 = vld [vmem:[%s5 + $0x8] sm:$0xff]
    %v634 = vld [vmem:[%s5 + $0x10] sm:$0xff]
    %v635 = vld [vmem:[%s5 + $0x18] sm:$0xff]
    %v636 = vld [vmem:[%s5 + $0x20] sm:$0xff]
    %v637 = vld [vmem:[%s5 + $0x28] sm:$0xff]
    %v638 = vld [vmem:[%s5 + $0x30] sm:$0xff]
    %v639 = vld [vmem:[%s5 + $0x38] sm:$0xff]
    %v640 = vld [vmem:[%s5 + $0x40] sm:$0xff]
    %v641 = vld [vmem:[%s5 + $0x48] sm:$0xff]
    %v642 = vld [vmem:[%s5 + $0x50] sm:$0xff]
    %v643 = vld [vmem:[%s5 + $0x58] sm:$0xff]
    %v644 = vld [vmem:[%s5 + $0x60] sm:$0xff]
    %v645 = vld [vmem:[%s5 + $0x68] sm:$0xff]
    %v646 = vld [vmem:[%s5 + $0x70] sm:$0xff]
    %v647 = vld [vmem:[%s5 + $0x78] sm:$0xff]
    %v648 = vld [vmem:[%s9] sm:$0xff]
    %649 = vmatprep.subr.mxu0 0.0
    %650 = vmatpush1.msra.mxu0 %v647
    %651 = vmatprep.subr.mxu0 0.0
    %652 = vmatpush1.msra.mxu0 %v646
    %653 = vmatprep.subr.mxu0 0.0
    %654 = vmatpush1.msra.mxu0 %v645
    %655 = vmatprep.subr.mxu0 0.0
    %656 = vmatpush1.msra.mxu0 %v644
    %657 = vmatprep.subr.mxu0 0.0
    %658 = vmatpush1.msra.mxu0 %v643
    %659 = vmatprep.subr.mxu0 0.0
    %660 = vmatpush1.msra.mxu0 %v642
    %661 = vmatprep.subr.mxu0 0.0
    %662 = vmatpush1.msra.mxu0 %v641
    %663 = vmatprep.subr.mxu0 0.0
    %664 = vmatpush1.msra.mxu0 %v640
    %665 = vmatprep.subr.mxu0 0.0
    %666 = vmatpush1.msra.mxu0 %v639
    %667 = vmatprep.subr.mxu0 0.0
    %668 = vmatpush1.msra.mxu0 %v638
    %669 = vmatprep.subr.mxu0 0.0
    %670 = vmatpush1.msra.mxu0 %v637
    %671 = vmatprep.subr.mxu0 0.0
    %672 = vmatpush1.msra.mxu0 %v636
    %673 = vmatprep.subr.mxu0 0.0
    %674 = vmatpush1.msra.mxu0 %v635
    %675 = vmatprep.subr.mxu0 0.0
    %676 = vmatpush1.msra.mxu0 %v634
    %677 = vmatprep.subr.mxu0 0.0
    %678 = vmatpush1.msra.mxu0 %v633
    %679 = vmatprep.subr.mxu0 0.0
    %680 = vmatpush1.msra.mxu0 %v632
    %681 = vmatprep.subr.mxu0 0.0
    %682 = vmatpush2.msra.mxu0 0.0
    %683 = vmatprep.subr.mxu0 0.0
    %684 = vmatpush2.msra.mxu0 0.0
    %685 = vmatprep.subr.mxu0 0.0
    %686 = vmatpush2.msra.mxu0 0.0
    %687 = vmatprep.subr.mxu0 0.0
    %688 = vmatpush2.msra.mxu0 0.0
    %689 = vmatprep.subr.mxu0 0.0
    %690 = vmatpush2.msra.mxu0 0.0
    %691 = vmatprep.subr.mxu0 0.0
    %692 = vmatpush2.msra.mxu0 0.0
    %693 = vmatprep.subr.mxu0 0.0
    %694 = vmatpush2.msra.mxu0 0.0
    %695 = vmatprep.subr.mxu0 0.0
    %696 = vmatpush2.msra.mxu0 0.0
    %697 = vmatprep.subr.mxu0 0.0
    %698 = vmatpush2.msra.mxu0 0.0
    %699 = vmatprep.subr.mxu0 0.0
    %700 = vmatpush2.msra.mxu0 0.0
    %701 = vmatprep.subr.mxu0 0.0
    %702 = vmatpush2.msra.mxu0 0.0
    %703 = vmatprep.subr.mxu0 0.0
    %704 = vmatpush2.msra.mxu0 0.0
    %705 = vmatprep.subr.mxu0 0.0
    %706 = vmatpush2.msra.mxu0 0.0
    %707 = vmatprep.subr.mxu0 0.0
    %708 = vmatpush2.msra.mxu0 0.0
    %709 = vmatprep.subr.mxu0 0.0
    %710 = vmatpush2.msra.mxu0 0.0
    %711 = vmatprep.subr.mxu0 0.0
    %712 = vmatpush2.msra.mxu0 0.0
    %713 = vmatprep.mubr.f32.mxu0 0.0
    %714 = vmatmul.mubr.f32.gmra.mxu0 0.0
    %v715 = vpop.f32.mrf.mxu0
    %v716 = vadd.f32 1e-10, %v715
    %v717 = vpop.f32.mrf.mxu0
    %718 = vdwg.mxu0
    %v719 = vrsqrt.pop %v716
    %v720 = vmul.f32 %v716, %v719
    %vm721 = vcmp.eq.f32.partialorder %v716, inf
    %v722 = vsel %vm721, %v716, %v720
    %vm723 = vcmp.eq.f32.partialorder %v716, 0.0
    %v724 = vand.u32 %v716, 2147483648
    %v725 = vsel %vm723, %v724, %v722
    %v726 = vmul.f32 %v648, %v725
    %727 = vmatprep.subr.mxu0 0.0
    %728 = vmatpush1.msra.mxu0 %v631
    %729 = vmatprep.subr.mxu0 0.0
    %730 = vmatpush1.msra.mxu0 %v630
    %731 = vmatprep.subr.mxu0 0.0
    %732 = vmatpush1.msra.mxu0 %v629
    %733 = vmatprep.subr.mxu0 0.0
    %734 = vmatpush1.msra.mxu0 %v628
    %735 = vmatprep.subr.mxu0 0.0
    %736 = vmatpush1.msra.mxu0 %v627
    %737 = vmatprep.subr.mxu0 0.0
    %738 = vmatpush1.msra.mxu0 %v626
    %739 = vmatprep.subr.mxu0 0.0
    %740 = vmatpush1.msra.mxu0 %v625
    %741 = vmatprep.subr.mxu0 0.0
    %742 = vmatpush1.msra.mxu0 %v624
    %743 = vmatprep.subr.mxu0 0.0
    %744 = vmatpush1.msra.mxu0 %v623
    %745 = vmatprep.subr.mxu0 0.0
    %746 = vmatpush1.msra.mxu0 %v622
    %747 = vmatprep.subr.mxu0 0.0
    %748 = vmatpush1.msra.mxu0 %v621
    %749 = vmatprep.subr.mxu0 0.0
    %750 = vmatpush1.msra.mxu0 %v620
    %751 = vmatprep.subr.mxu0 0.0
    %752 = vmatpush1.msra.mxu0 %v619
    %753 = vmatprep.subr.mxu0 0.0
    %754 = vmatpush1.msra.mxu0 %v618
    %755 = vmatprep.subr.mxu0 0.0
    %756 = vmatpush1.msra.mxu0 %v617
    %757 = vmatprep.subr.mxu0 0.0
    %758 = vmatpush1.msra.mxu0 %v616
    %759 = vmatprep.subr.mxu0 0.0
    %760 = vmatpush2.msra.mxu0 0.0
    %761 = vmatprep.subr.mxu0 0.0
    %762 = vmatpush2.msra.mxu0 0.0
    %763 = vmatprep.subr.mxu0 0.0
    %764 = vmatpush2.msra.mxu0 0.0
    %765 = vmatprep.subr.mxu0 0.0
    %766 = vmatpush2.msra.mxu0 0.0
    %767 = vmatprep.subr.mxu0 0.0
    %768 = vmatpush2.msra.mxu0 0.0
    %769 = vmatprep.subr.mxu0 0.0
    %770 = vmatpush2.msra.mxu0 0.0
    %771 = vmatprep.subr.mxu0 0.0
    %772 = vmatpush2.msra.mxu0 0.0
    %773 = vmatprep.subr.mxu0 0.0
    %774 = vmatpush2.msra.mxu0 0.0
    %775 = vmatprep.subr.mxu0 0.0
    %776 = vmatpush2.msra.mxu0 0.0
    %777 = vmatprep.subr.mxu0 0.0
    %778 = vmatpush2.msra.mxu0 0.0
    %779 = vmatprep.subr.mxu0 0.0
    %780 = vmatpush2.msra.mxu0 0.0
    %781 = vmatprep.subr.mxu0 0.0
    %782 = vmatpush2.msra.mxu0 0.0
    %783 = vmatprep.subr.mxu0 0.0
    %784 = vmatpush2.msra.mxu0 0.0
    %785 = vmatprep.subr.mxu0 0.0
    %786 = vmatpush2.msra.mxu0 0.0
    %787 = vmatprep.subr.mxu0 0.0
    %788 = vmatpush2.msra.mxu0 0.0
    %789 = vmatprep.subr.mxu0 0.0
    %790 = vmatpush2.msra.mxu0 0.0
    %791 = vmatprep.mubr.f32.mxu0 0.0
    %792 = vmatmul.mubr.f32.gmra.mxu0 0.0
    %v793 = vpop.f32.mrf.mxu0
    %v794 = vadd.f32 %v726, %v793
    %v795 = vpop.f32.mrf.mxu0
    %796 = vdwg.mxu0
    %v797 = vld [vmem:[#allocation2] sm:$0xff]
    %v798 = vadd.f32 %v794, %v797
    %v799 = vtanh.pop %v798
    %800 = vst [vmem:[%s12] sm:$0xff] %v799
    %v801 = vmul.f32 %v799, %v799
    %v802 = vld [vmem:[%s9 + $0x8] sm:$0xff]
    %803 = vmatprep.subr.mxu0 0.0
    %804 = vmatpush1.msra.mxu0 %v647
    %805 = vmatprep.subr.mxu0 0.0
    %806 = vmatpush1.msra.mxu0 %v646
    %807 = vmatprep.subr.mxu0 0.0
    %808 = vmatpush1.msra.mxu0 %v645
    %809 = vmatprep.subr.mxu0 0.0
    %810 = vmatpush1.msra.mxu0 %v644
    %811 = vmatprep.subr.mxu0 0.0
    %812 = vmatpush1.msra.mxu0 %v643
    %813 = vmatprep.subr.mxu0 0.0
    %814 = vmatpush1.msra.mxu0 %v642
    %815 = vmatprep.subr.mxu0 0.0
    %816 = vmatpush1.msra.mxu0 %v641
    %817 = vmatprep.subr.mxu0 0.0
    %818 = vmatpush1.msra.mxu0 %v640
    %819 = vmatprep.subr.mxu0 0.0
    %820 = vmatpush1.msra.mxu0 %v639
    %821 = vmatprep.subr.mxu0 0.0
    %822 = vmatpush1.msra.mxu0 %v638
    %823 = vmatprep.subr.mxu0 0.0
    %824 = vmatpush1.msra.mxu0 %v637
    %825 = vmatprep.subr.mxu0 0.0
    %826 = vmatpush1.msra.mxu0 %v636
    %827 = vmatprep.subr.mxu0 0.0
    %828 = vmatpush1.msra.mxu0 %v635
    %829 = vmatprep.subr.mxu0 0.0
    %830 = vmatpush1.msra.mxu0 %v634
    %831 = vmatprep.subr.mxu0 0.0
    %832 = vmatpush1.msra.mxu0 %v633
    %833 = vmatprep.subr.mxu0 0.0
    %834 = vmatpush1.msra.mxu0 %v632
    %835 = vmatprep.subr.mxu0 0.0
    %836 = vmatpush2.msra.mxu0 0.0
    %837 = vmatprep.subr.mxu0 0.0
    %838 = vmatpush2.msra.mxu0 0.0
    %839 = vmatprep.subr.mxu0 0.0
    %840 = vmatpush2.msra.mxu0 0.0
    %841 = vmatprep.subr.mxu0 0.0
    %842 = vmatpush2.msra.mxu0 0.0
    %843 = vmatprep.subr.mxu0 0.0
    %844 = vmatpush2.msra.mxu0 0.0
    %845 = vmatprep.subr.mxu0 0.0
    %846 = vmatpush2.msra.mxu0 0.0
    %847 = vmatprep.subr.mxu0 0.0
    %848 = vmatpush2.msra.mxu0 0.0
    %849 = vmatprep.subr.mxu0 0.0
    %850 = vmatpush2.msra.mxu0 0.0
    %851 = vmatprep.subr.mxu0 0.0
    %852 = vmatpush2.msra.mxu0 0.0
    %853 = vmatprep.subr.mxu0 0.0
    %854 = vmatpush2.msra.mxu0 0.0
    %855 = vmatprep.subr.mxu0 0.0
    %856 = vmatpush2.msra.mxu0 0.0
    %857 = vmatprep.subr.mxu0 0.0
    %858 = vmatpush2.msra.mxu0 0.0
    %859 = vmatprep.subr.mxu0 0.0
    %860 = vmatpush2.msra.mxu0 0.0
    %861 = vmatprep.subr.mxu0 0.0
    %862 = vmatpush2.msra.mxu0 0.0
    %863 = vmatprep.subr.mxu0 0.0
    %864 = vmatpush2.msra.mxu0 0.0
    %865 = vmatprep.subr.mxu0 0.0
    %866 = vmatpush2.msra.mxu0 0.0
    %867 = vmatprep.mubr.f32.mxu0 0.0
    %868 = vmatmul.mubr.f32.gmra.mxu0 %v801
    %v869 = vpop.f32.mrf.mxu0
    %v870 = vadd.f32 1e-10, %v869
    %v871 = vpop.f32.mrf.mxu0
    %872 = vdwg.mxu0
    %v873 = vrsqrt.pop %v870
    %v874 = vmul.f32 %v870, %v873
    %vm875 = vcmp.eq.f32.partialorder %v870, inf
    %v876 = vsel %vm875, %v870, %v874
    %vm877 = vcmp.eq.f32.partialorder %v870, 0.0
    %v878 = vand.u32 %v870, 2147483648
    %v879 = vsel %vm877, %v878, %v876
    %v880 = vmul.f32 %v802, %v879
    %881 = vmatprep.subr.mxu0 0.0
    %882 = vmatpush1.msra.mxu0 %v631
    %883 = vmatprep.subr.mxu0 0.0
    %884 = vmatpush1.msra.mxu0 %v630
    %885 = vmatprep.subr.mxu0 0.0
    %886 = vmatpush1.msra.mxu0 %v629
    %887 = vmatprep.subr.mxu0 0.0
    %888 = vmatpush1.msra.mxu0 %v628
    %889 = vmatprep.subr.mxu0 0.0
    %890 = vmatpush1.msra.mxu0 %v627
    %891 = vmatprep.subr.mxu0 0.0
    %892 = vmatpush1.msra.mxu0 %v626
    %893 = vmatprep.subr.mxu0 0.0
    %894 = vmatpush1.msra.mxu0 %v625
    %895 = vmatprep.subr.mxu0 0.0
    %896 = vmatpush1.msra.mxu0 %v624
    %897 = vmatprep.subr.mxu0 0.0
    %898 = vmatpush1.msra.mxu0 %v623
    %899 = vmatprep.subr.mxu0 0.0
    %900 = vmatpush1.msra.mxu0 %v622
    %901 = vmatprep.subr.mxu0 0.0
    %902 = vmatpush1.msra.mxu0 %v621
    %903 = vmatprep.subr.mxu0 0.0
    %904 = vmatpush1.msra.mxu0 %v620
    %905 = vmatprep.subr.mxu0 0.0
    %906 = vmatpush1.msra.mxu0 %v619
    %907 = vmatprep.subr.mxu0 0.0
    %908 = vmatpush1.msra.mxu0 %v618
    %909 = vmatprep.subr.mxu0 0.0
    %910 = vmatpush1.msra.mxu0 %v617
    %911 = vmatprep.subr.mxu0 0.0
    %912 = vmatpush1.msra.mxu0 %v616
    %913 = vmatprep.subr.mxu0 0.0
    %914 = vmatpush2.msra.mxu0 0.0
    %915 = vmatprep.subr.mxu0 0.0
    %916 = vmatpush2.msra.mxu0 0.0
    %917 = vmatprep.subr.mxu0 0.0
    %918 = vmatpush2.msra.mxu0 0.0
    %919 = vmatprep.subr.mxu0 0.0
    %920 = vmatpush2.msra.mxu0 0.0
    %921 = vmatprep.subr.mxu0 0.0
    %922 = vmatpush2.msra.mxu0 0.0
    %923 = vmatprep.subr.mxu0 0.0
    %924 = vmatpush2.msra.mxu0 0.0
    %925 = vmatprep.subr.mxu0 0.0
    %926 = vmatpush2.msra.mxu0 0.0
    %927 = vmatprep.subr.mxu0 0.0
    %928 = vmatpush2.msra.mxu0 0.0
    %929 = vmatprep.subr.mxu0 0.0
    %930 = vmatpush2.msra.mxu0 0.0
    %931 = vmatprep.subr.mxu0 0.0
    %932 = vmatpush2.msra.mxu0 0.0
    %933 = vmatprep.subr.mxu0 0.0
    %934 = vmatpush2.msra.mxu0 0.0
    %935 = vmatprep.subr.mxu0 0.0
    %936 = vmatpush2.msra.mxu0 0.0
    %937 = vmatprep.subr.mxu0 0.0
    %938 = vmatpush2.msra.mxu0 0.0
    %939 = vmatprep.subr.mxu0 0.0
    %940 = vmatpush2.msra.mxu0 0.0
    %941 = vmatprep.subr.mxu0 0.0
    %942 = vmatpush2.msra.mxu0 0.0
    %943 = vmatprep.subr.mxu0 0.0
    %944 = vmatpush2.msra.mxu0 0.0
    %945 = vmatprep.mubr.f32.mxu0 0.0
    %946 = vmatmul.mubr.f32.gmra.mxu0 %v799
    %v947 = vpop.f32.mrf.mxu0
    %v948 = vadd.f32 %v880, %v947
    %v949 = vpop.f32.mrf.mxu0
    %950 = vdwg.mxu0
    %v951 = vld [vmem:[#allocation2 + $0x8] sm:$0xff]
    %v952 = vadd.f32 %v948, %v951
    %v953 = vtanh.pop %v952
    %954 = vst [vmem:[%s12 + $0x8] sm:$0xff] %v953
    %v955 = vmul.f32 %v953, %v953
    %v956 = vld [vmem:[%s9 + $0x10] sm:$0xff]
    %957 = vmatprep.subr.mxu0 0.0
    %958 = vmatpush1.msra.mxu0 %v647
    %959 = vmatprep.subr.mxu0 0.0
    %960 = vmatpush1.msra.mxu0 %v646
    %961 = vmatprep.subr.mxu0 0.0
    %962 = vmatpush1.msra.mxu0 %v645
    %963 = vmatprep.subr.mxu0 0.0
    %964 = vmatpush1.msra.mxu0 %v644
    %965 = vmatprep.subr.mxu0 0.0
    %966 = vmatpush1.msra.mxu0 %v643
    %967 = vmatprep.subr.mxu0 0.0
    %968 = vmatpush1.msra.mxu0 %v642
    %969 = vmatprep.subr.mxu0 0.0
    %970 = vmatpush1.msra.mxu0 %v641
    %971 = vmatprep.subr.mxu0 0.0
    %972 = vmatpush1.msra.mxu0 %v640
    %973 = vmatprep.subr.mxu0 0.0
    %974 = vmatpush1.msra.mxu0 %v639
    %975 = vmatprep.subr.mxu0 0.0
    %976 = vmatpush1.msra.mxu0 %v638
    %977 = vmatprep.subr.mxu0 0.0
    %978 = vmatpush1.msra.mxu0 %v637
    %979 = vmatprep.subr.mxu0 0.0
    %980 = vmatpush1.msra.mxu0 %v636
    %981 = vmatprep.subr.mxu0 0.0
    %982 = vmatpush1.msra.mxu0 %v635
    %983 = vmatprep.subr.mxu0 0.0
    %984 = vmatpush1.msra.mxu0 %v634
    %985 = vmatprep.subr.mxu0 0.0
    %986 = vmatpush1.msra.mxu0 %v633
    %987 = vmatprep.subr.mxu0 0.0
    %988 = vmatpush1.msra.mxu0 %v632
    %989 = vmatprep.subr.mxu0 0.0
    %990 = vmatpush2.msra.mxu0 0.0
    %991 = vmatprep.subr.mxu0 0.0
    %992 = vmatpush2.msra.mxu0 0.0
    %993 = vmatprep.subr.mxu0 0.0
    %994 = vmatpush2.msra.mxu0 0.0
    %995 = vmatprep.subr.mxu0 0.0
    %996 = vmatpush2.msra.mxu0 0.0
    %997 = vmatprep.subr.mxu0 0.0
    %998 = vmatpush2.msra.mxu0 0.0
    %999 = vmatprep.subr.mxu0 0.0
    %1000 = vmatpush2.msra.mxu0 0.0
    %1001 = vmatprep.subr.mxu0 0.0
    %1002 = vmatpush2.msra.mxu0 0.0
    %1003 = vmatprep.subr.mxu0 0.0
    %1004 = vmatpush2.msra.mxu0 0.0
    %1005 = vmatprep.subr.mxu0 0.0
    %1006 = vmatpush2.msra.mxu0 0.0
    %1007 = vmatprep.subr.mxu0 0.0
    %1008 = vmatpush2.msra.mxu0 0.0
    %1009 = vmatprep.subr.mxu0 0.0
    %1010 = vmatpush2.msra.mxu0 0.0
    %1011 = vmatprep.subr.mxu0 0.0
    %1012 = vmatpush2.msra.mxu0 0.0
    %1013 = vmatprep.subr.mxu0 0.0
    %1014 = vmatpush2.msra.mxu0 0.0
    %1015 = vmatprep.subr.mxu0 0.0
    %1016 = vmatpush2.msra.mxu0 0.0
    %1017 = vmatprep.subr.mxu0 0.0
    %1018 = vmatpush2.msra.mxu0 0.0
    %1019 = vmatprep.subr.mxu0 0.0
    %1020 = vmatpush2.msra.mxu0 0.0
    %1021 = vmatprep.mubr.f32.mxu0 0.0
    %1022 = vmatmul.mubr.f32.gmra.mxu0 %v955
    %v1023 = vpop.f32.mrf.mxu0
    %v1024 = vadd.f32 1e-10, %v1023
    %v1025 = vpop.f32.mrf.mxu0
    %1026 = vdwg.mxu0
    %v1027 = vrsqrt.pop %v1024
    %v1028 = vmul.f32 %v1024, %v1027
    %vm1029 = vcmp.eq.f32.partialorder %v1024, inf
    %v1030 = vsel %vm1029, %v1024, %v1028
    %vm1031 = vcmp.eq.f32.partialorder %v1024, 0.0
    %v1032 = vand.u32 %v1024, 2147483648
    %v1033 = vsel %vm1031, %v1032, %v1030
    %v1034 = vmul.f32 %v956, %v1033
    %1035 = vmatprep.subr.mxu0 0.0
    %1036 = vmatpush1.msra.mxu0 %v631
    %1037 = vmatprep.subr.mxu0 0.0
    %1038 = vmatpush1.msra.mxu0 %v630
    %1039 = vmatprep.subr.mxu0 0.0
    %1040 = vmatpush1.msra.mxu0 %v629
    %1041 = vmatprep.subr.mxu0 0.0
    %1042 = vmatpush1.msra.mxu0 %v628
    %1043 = vmatprep.subr.mxu0 0.0
    %1044 = vmatpush1.msra.mxu0 %v627
    %1045 = vmatprep.subr.mxu0 0.0
    %1046 = vmatpush1.msra.mxu0 %v626
    %1047 = vmatprep.subr.mxu0 0.0
    %1048 = vmatpush1.msra.mxu0 %v625
    %1049 = vmatprep.subr.mxu0 0.0
    %1050 = vmatpush1.msra.mxu0 %v624
    %1051 = vmatprep.subr.mxu0 0.0
    %1052 = vmatpush1.msra.mxu0 %v623
    %1053 = vmatprep.subr.mxu0 0.0
    %1054 = vmatpush1.msra.mxu0 %v622
    %1055 = vmatprep.subr.mxu0 0.0
    %1056 = vmatpush1.msra.mxu0 %v621
    %1057 = vmatprep.subr.mxu0 0.0
    %1058 = vmatpush1.msra.mxu0 %v620
    %1059 = vmatprep.subr.mxu0 0.0
    %1060 = vmatpush1.msra.mxu0 %v619
    %1061 = vmatprep.subr.mxu0 0.0
    %1062 = vmatpush1.msra.mxu0 %v618
    %1063 = vmatprep.subr.mxu0 0.0
    %1064 = vmatpush1.msra.mxu0 %v617
    %1065 = vmatprep.subr.mxu0 0.0
    %1066 = vmatpush1.msra.mxu0 %v616
    %1067 = vmatprep.subr.mxu0 0.0
    %1068 = vmatpush2.msra.mxu0 0.0
    %1069 = vmatprep.subr.mxu0 0.0
    %1070 = vmatpush2.msra.mxu0 0.0
    %1071 = vmatprep.subr.mxu0 0.0
    %1072 = vmatpush2.msra.mxu0 0.0
    %1073 = vmatprep.subr.mxu0 0.0
    %1074 = vmatpush2.msra.mxu0 0.0
    %1075 = vmatprep.subr.mxu0 0.0
    %1076 = vmatpush2.msra.mxu0 0.0
    %1077 = vmatprep.subr.mxu0 0.0
    %1078 = vmatpush2.msra.mxu0 0.0
    %1079 = vmatprep.subr.mxu0 0.0
    %1080 = vmatpush2.msra.mxu0 0.0
    %1081 = vmatprep.subr.mxu0 0.0
    %1082 = vmatpush2.msra.mxu0 0.0
    %1083 = vmatprep.subr.mxu0 0.0
    %1084 = vmatpush2.msra.mxu0 0.0
    %1085 = vmatprep.subr.mxu0 0.0
    %1086 = vmatpush2.msra.mxu0 0.0
    %1087 = vmatprep.subr.mxu0 0.0
    %1088 = vmatpush2.msra.mxu0 0.0
    %1089 = vmatprep.subr.mxu0 0.0
    %1090 = vmatpush2.msra.mxu0 0.0
    %1091 = vmatprep.subr.mxu0 0.0
    %1092 = vmatpush2.msra.mxu0 0.0
    %1093 = vmatprep.subr.mxu0 0.0
    %1094 = vmatpush2.msra.mxu0 0.0
    %1095 = vmatprep.subr.mxu0 0.0
    %1096 = vmatpush2.msra.mxu0 0.0
    %1097 = vmatprep.subr.mxu0 0.0
    %1098 = vmatpush2.msra.mxu0 0.0
    %1099 = vmatprep.mubr.f32.mxu0 0.0
    %1100 = vmatmul.mubr.f32.gmra.mxu0 %v953
    %v1101 = vpop.f32.mrf.mxu0
    %v1102 = vadd.f32 %v1034, %v1101
    %v1103 = vpop.f32.mrf.mxu0
    %1104 = vdwg.mxu0
    %v1105 = vld [vmem:[#allocation2 + $0x10] sm:$0xff]
    %v1106 = vadd.f32 %v1102, %v1105
    %v1107 = vtanh.pop %v1106
    %1108 = vst [vmem:[%s12 + $0x10] sm:$0xff] %v1107
    %v1109 = vmul.f32 %v1107, %v1107
    %v1110 = vld [vmem:[%s9 + $0x18] sm:$0xff]
    %1111 = vmatprep.subr.mxu0 0.0
    %1112 = vmatpush1.msra.mxu0 %v647
    %1113 = vmatprep.subr.mxu0 0.0
    %1114 = vmatpush1.msra.mxu0 %v646
    %1115 = vmatprep.subr.mxu0 0.0
    %1116 = vmatpush1.msra.mxu0 %v645
    %1117 = vmatprep.subr.mxu0 0.0
    %1118 = vmatpush1.msra.mxu0 %v644
    %1119 = vmatprep.subr.mxu0 0.0
    %1120 = vmatpush1.msra.mxu0 %v643
    %1121 = vmatprep.subr.mxu0 0.0
    %1122 = vmatpush1.msra.mxu0 %v642
    %1123 = vmatprep.subr.mxu0 0.0
    %1124 = vmatpush1.msra.mxu0 %v641
    %1125 = vmatprep.subr.mxu0 0.0
    %1126 = vmatpush1.msra.mxu0 %v640
    %1127 = vmatprep.subr.mxu0 0.0
    %1128 = vmatpush1.msra.mxu0 %v639
    %1129 = vmatprep.subr.mxu0 0.0
    %1130 = vmatpush1.msra.mxu0 %v638
    %1131 = vmatprep.subr.mxu0 0.0
    %1132 = vmatpush1.msra.mxu0 %v637
    %1133 = vmatprep.subr.mxu0 0.0
    %1134 = vmatpush1.msra.mxu0 %v636
    %1135 = vmatprep.subr.mxu0 0.0
    %1136 = vmatpush1.msra.mxu0 %v635
    %1137 = vmatprep.subr.mxu0 0.0
    %1138 = vmatpush1.msra.mxu0 %v634
    %1139 = vmatprep.subr.mxu0 0.0
    %1140 = vmatpush1.msra.mxu0 %v633
    %1141 = vmatprep.subr.mxu0 0.0
    %1142 = vmatpush1.msra.mxu0 %v632
    %1143 = vmatprep.subr.mxu0 0.0
    %1144 = vmatpush2.msra.mxu0 0.0
    %1145 = vmatprep.subr.mxu0 0.0
    %1146 = vmatpush2.msra.mxu0 0.0
    %1147 = vmatprep.subr.mxu0 0.0
    %1148 = vmatpush2.msra.mxu0 0.0
    %1149 = vmatprep.subr.mxu0 0.0
    %1150 = vmatpush2.msra.mxu0 0.0
    %1151 = vmatprep.subr.mxu0 0.0
    %1152 = vmatpush2.msra.mxu0 0.0
    %1153 = vmatprep.subr.mxu0 0.0
    %1154 = vmatpush2.msra.mxu0 0.0
    %1155 = vmatprep.subr.mxu0 0.0
    %1156 = vmatpush2.msra.mxu0 0.0
    %1157 = vmatprep.subr.mxu0 0.0
    %1158 = vmatpush2.msra.mxu0 0.0
    %1159 = vmatprep.subr.mxu0 0.0
    %1160 = vmatpush2.msra.mxu0 0.0
    %1161 = vmatprep.subr.mxu0 0.0
    %1162 = vmatpush2.msra.mxu0 0.0
    %1163 = vmatprep.subr.mxu0 0.0
    %1164 = vmatpush2.msra.mxu0 0.0
    %1165 = vmatprep.subr.mxu0 0.0
    %1166 = vmatpush2.msra.mxu0 0.0
    %1167 = vmatprep.subr.mxu0 0.0
    %1168 = vmatpush2.msra.mxu0 0.0
    %1169 = vmatprep.subr.mxu0 0.0
    %1170 = vmatpush2.msra.mxu0 0.0
    %1171 = vmatprep.subr.mxu0 0.0
    %1172 = vmatpush2.msra.mxu0 0.0
    %1173 = vmatprep.subr.mxu0 0.0
    %1174 = vmatpush2.msra.mxu0 0.0
    %1175 = vmatprep.mubr.f32.mxu0 0.0
    %1176 = vmatmul.mubr.f32.gmra.mxu0 %v1109
    %v1177 = vpop.f32.mrf.mxu0
    %v1178 = vadd.f32 1e-10, %v1177
    %v1179 = vpop.f32.mrf.mxu0
    %1180 = vdwg.mxu0
    %v1181 = vrsqrt.pop %v1178
    %v1182 = vmul.f32 %v1178, %v1181
    %vm1183 = vcmp.eq.f32.partialorder %v1178, inf
    %v1184 = vsel %vm1183, %v1178, %v1182
    %vm1185 = vcmp.eq.f32.partialorder %v1178, 0.0
    %v1186 = vand.u32 %v1178, 2147483648
    %v1187 = vsel %vm1185, %v1186, %v1184
    %v1188 = vmul.f32 %v1110, %v1187
    %1189 = vmatprep.subr.mxu0 0.0
    %1190 = vmatpush1.msra.mxu0 %v631
    %1191 = vmatprep.subr.mxu0 0.0
    %1192 = vmatpush1.msra.mxu0 %v630
    %1193 = vmatprep.subr.mxu0 0.0
    %1194 = vmatpush1.msra.mxu0 %v629
    %1195 = vmatprep.subr.mxu0 0.0
    %1196 = vmatpush1.msra.mxu0 %v628
    %1197 = vmatprep.subr.mxu0 0.0
    %1198 = vmatpush1.msra.mxu0 %v627
    %1199 = vmatprep.subr.mxu0 0.0
    %1200 = vmatpush1.msra.mxu0 %v626
    %1201 = vmatprep.subr.mxu0 0.0
    %1202 = vmatpush1.msra.mxu0 %v625
    %1203 = vmatprep.subr.mxu0 0.0
    %1204 = vmatpush1.msra.mxu0 %v624
    %1205 = vmatprep.subr.mxu0 0.0
    %1206 = vmatpush1.msra.mxu0 %v623
    %1207 = vmatprep.subr.mxu0 0.0
    %1208 = vmatpush1.msra.mxu0 %v622
    %1209 = vmatprep.subr.mxu0 0.0
    %1210 = vmatpush1.msra.mxu0 %v621
    %1211 = vmatprep.subr.mxu0 0.0
    %1212 = vmatpush1.msra.mxu0 %v620
    %1213 = vmatprep.subr.mxu0 0.0
    %1214 = vmatpush1.msra.mxu0 %v619
    %1215 = vmatprep.subr.mxu0 0.0
    %1216 = vmatpush1.msra.mxu0 %v618
    %1217 = vmatprep.subr.mxu0 0.0
    %1218 = vmatpush1.msra.mxu0 %v617
    %1219 = vmatprep.subr.mxu0 0.0
    %1220 = vmatpush1.msra.mxu0 %v616
    %1221 = vmatprep.subr.mxu0 0.0
    %1222 = vmatpush2.msra.mxu0 0.0
    %1223 = vmatprep.subr.mxu0 0.0
    %1224 = vmatpush2.msra.mxu0 0.0
    %1225 = vmatprep.subr.mxu0 0.0
    %1226 = vmatpush2.msra.mxu0 0.0
    %1227 = vmatprep.subr.mxu0 0.0
    %1228 = vmatpush2.msra.mxu0 0.0
    %1229 = vmatprep.subr.mxu0 0.0
    %1230 = vmatpush2.msra.mxu0 0.0
    %1231 = vmatprep.subr.mxu0 0.0
    %1232 = vmatpush2.msra.mxu0 0.0
    %1233 = vmatprep.subr.mxu0 0.0
    %1234 = vmatpush2.msra.mxu0 0.0
    %1235 = vmatprep.subr.mxu0 0.0
    %1236 = vmatpush2.msra.mxu0 0.0
    %1237 = vmatprep.subr.mxu0 0.0
    %1238 = vmatpush2.msra.mxu0 0.0
    %1239 = vmatprep.subr.mxu0 0.0
    %1240 = vmatpush2.msra.mxu0 0.0
    %1241 = vmatprep.subr.mxu0 0.0
    %1242 = vmatpush2.msra.mxu0 0.0
    %1243 = vmatprep.subr.mxu0 0.0
    %1244 = vmatpush2.msra.mxu0 0.0
    %1245 = vmatprep.subr.mxu0 0.0
    %1246 = vmatpush2.msra.mxu0 0.0
    %1247 = vmatprep.subr.mxu0 0.0
    %1248 = vmatpush2.msra.mxu0 0.0
    %1249 = vmatprep.subr.mxu0 0.0
    %1250 = vmatpush2.msra.mxu0 0.0
    %1251 = vmatprep.subr.mxu0 0.0
    %1252 = vmatpush2.msra.mxu0 0.0
    %1253 = vmatprep.mubr.f32.mxu0 0.0
    %1254 = vmatmul.mubr.f32.gmra.mxu0 %v1107
    %v1255 = vpop.f32.mrf.mxu0
    %v1256 = vadd.f32 %v1188, %v1255
    %v1257 = vpop.f32.mrf.mxu0
    %1258 = vdwg.mxu0
    %v1259 = vld [vmem:[#allocation2 + $0x18] sm:$0xff]
    %v1260 = vadd.f32 %v1256, %v1259
    %v1261 = vtanh.pop %v1260
    %1262 = vst [vmem:[%s12 + $0x18] sm:$0xff] %v1261
    %v1263 = vmul.f32 %v1261, %v1261
    %v1264 = vld [vmem:[%s9 + $0x20] sm:$0xff]
    %1265 = vmatprep.subr.mxu0 0.0
    %1266 = vmatpush1.msra.mxu0 %v647
    %1267 = vmatprep.subr.mxu0 0.0
    %1268 = vmatpush1.msra.mxu0 %v646
    %1269 = vmatprep.subr.mxu0 0.0
    %1270 = vmatpush1.msra.mxu0 %v645
    %1271 = vmatprep.subr.mxu0 0.0
    %1272 = vmatpush1.msra.mxu0 %v644
    %1273 = vmatprep.subr.mxu0 0.0
    %1274 = vmatpush1.msra.mxu0 %v643
    %1275 = vmatprep.subr.mxu0 0.0
    %1276 = vmatpush1.msra.mxu0 %v642
    %1277 = vmatprep.subr.mxu0 0.0
    %1278 = vmatpush1.msra.mxu0 %v641
    %1279 = vmatprep.subr.mxu0 0.0
    %1280 = vmatpush1.msra.mxu0 %v640
    %1281 = vmatprep.subr.mxu0 0.0
    %1282 = vmatpush1.msra.mxu0 %v639
    %1283 = vmatprep.subr.mxu0 0.0
    %1284 = vmatpush1.msra.mxu0 %v638
    %1285 = vmatprep.subr.mxu0 0.0
    %1286 = vmatpush1.msra.mxu0 %v637
    %1287 = vmatprep.subr.mxu0 0.0
    %1288 = vmatpush1.msra.mxu0 %v636
    %1289 = vmatprep.subr.mxu0 0.0
    %1290 = vmatpush1.msra.mxu0 %v635
    %1291 = vmatprep.subr.mxu0 0.0
    %1292 = vmatpush1.msra.mxu0 %v634
    %1293 = vmatprep.subr.mxu0 0.0
    %1294 = vmatpush1.msra.mxu0 %v633
    %1295 = vmatprep.subr.mxu0 0.0
    %1296 = vmatpush1.msra.mxu0 %v632
    %1297 = vmatprep.subr.mxu0 0.0
    %1298 = vmatpush2.msra.mxu0 0.0
    %1299 = vmatprep.subr.mxu0 0.0
    %1300 = vmatpush2.msra.mxu0 0.0
    %1301 = vmatprep.subr.mxu0 0.0
    %1302 = vmatpush2.msra.mxu0 0.0
    %1303 = vmatprep.subr.mxu0 0.0
    %1304 = vmatpush2.msra.mxu0 0.0
    %1305 = vmatprep.subr.mxu0 0.0
    %1306 = vmatpush2.msra.mxu0 0.0
    %1307 = vmatprep.subr.mxu0 0.0
    %1308 = vmatpush2.msra.mxu0 0.0
    %1309 = vmatprep.subr.mxu0 0.0
    %1310 = vmatpush2.msra.mxu0 0.0
    %1311 = vmatprep.subr.mxu0 0.0
    %1312 = vmatpush2.msra.mxu0 0.0
    %1313 = vmatprep.subr.mxu0 0.0
    %1314 = vmatpush2.msra.mxu0 0.0
    %1315 = vmatprep.subr.mxu0 0.0
    %1316 = vmatpush2.msra.mxu0 0.0
    %1317 = vmatprep.subr.mxu0 0.0
    %1318 = vmatpush2.msra.mxu0 0.0
    %1319 = vmatprep.subr.mxu0 0.0
    %1320 = vmatpush2.msra.mxu0 0.0
    %1321 = vmatprep.subr.mxu0 0.0
    %1322 = vmatpush2.msra.mxu0 0.0
    %1323 = vmatprep.subr.mxu0 0.0
    %1324 = vmatpush2.msra.mxu0 0.0
    %1325 = vmatprep.subr.mxu0 0.0
    %1326 = vmatpush2.msra.mxu0 0.0
    %1327 = vmatprep.subr.mxu0 0.0
    %1328 = vmatpush2.msra.mxu0 0.0
    %1329 = vmatprep.mubr.f32.mxu0 0.0
    %1330 = vmatmul.mubr.f32.gmra.mxu0 %v1263
    %v1331 = vpop.f32.mrf.mxu0
    %v1332 = vadd.f32 1e-10, %v1331
    %v1333 = vpop.f32.mrf.mxu0
    %1334 = vdwg.mxu0
    %v1335 = vrsqrt.pop %v1332
    %v1336 = vmul.f32 %v1332, %v1335
    %vm1337 = vcmp.eq.f32.partialorder %v1332, inf
    %v1338 = vsel %vm1337, %v1332, %v1336
    %vm1339 = vcmp.eq.f32.partialorder %v1332, 0.0
    %v1340 = vand.u32 %v1332, 2147483648
    %v1341 = vsel %vm1339, %v1340, %v1338
    %v1342 = vmul.f32 %v1264, %v1341
    %1343 = vmatprep.subr.mxu0 0.0
    %1344 = vmatpush1.msra.mxu0 %v631
    %1345 = vmatprep.subr.mxu0 0.0
    %1346 = vmatpush1.msra.mxu0 %v630
    %1347 = vmatprep.subr.mxu0 0.0
    %1348 = vmatpush1.msra.mxu0 %v629
    %1349 = vmatprep.subr.mxu0 0.0
    %1350 = vmatpush1.msra.mxu0 %v628
    %1351 = vmatprep.subr.mxu0 0.0
    %1352 = vmatpush1.msra.mxu0 %v627
    %1353 = vmatprep.subr.mxu0 0.0
    %1354 = vmatpush1.msra.mxu0 %v626
    %1355 = vmatprep.subr.mxu0 0.0
    %1356 = vmatpush1.msra.mxu0 %v625
    %1357 = vmatprep.subr.mxu0 0.0
    %1358 = vmatpush1.msra.mxu0 %v624
    %1359 = vmatprep.subr.mxu0 0.0
    %1360 = vmatpush1.msra.mxu0 %v623
    %1361 = vmatprep.subr.mxu0 0.0
    %1362 = vmatpush1.msra.mxu0 %v622
    %1363 = vmatprep.subr.mxu0 0.0
    %1364 = vmatpush1.msra.mxu0 %v621
    %1365 = vmatprep.subr.mxu0 0.0
    %1366 = vmatpush1.msra.mxu0 %v620
    %1367 = vmatprep.subr.mxu0 0.0
    %1368 = vmatpush1.msra.mxu0 %v619
    %1369 = vmatprep.subr.mxu0 0.0
    %1370 = vmatpush1.msra.mxu0 %v618
    %1371 = vmatprep.subr.mxu0 0.0
    %1372 = vmatpush1.msra.mxu0 %v617
    %1373 = vmatprep.subr.mxu0 0.0
    %1374 = vmatpush1.msra.mxu0 %v616
    %1375 = vmatprep.subr.mxu0 0.0
    %1376 = vmatpush2.msra.mxu0 0.0
    %1377 = vmatprep.subr.mxu0 0.0
    %1378 = vmatpush2.msra.mxu0 0.0
    %1379 = vmatprep.subr.mxu0 0.0
    %1380 = vmatpush2.msra.mxu0 0.0
    %1381 = vmatprep.subr.mxu0 0.0
    %1382 = vmatpush2.msra.mxu0 0.0
    %1383 = vmatprep.subr.mxu0 0.0
    %1384 = vmatpush2.msra.mxu0 0.0
    %1385 = vmatprep.subr.mxu0 0.0
    %1386 = vmatpush2.msra.mxu0 0.0
    %1387 = vmatprep.subr.mxu0 0.0
    %1388 = vmatpush2.msra.mxu0 0.0
    %1389 = vmatprep.subr.mxu0 0.0
    %1390 = vmatpush2.msra.mxu0 0.0
    %1391 = vmatprep.subr.mxu0 0.0
    %1392 = vmatpush2.msra.mxu0 0.0
    %1393 = vmatprep.subr.mxu0 0.0
    %1394 = vmatpush2.msra.mxu0 0.0
    %1395 = vmatprep.subr.mxu0 0.0
    %1396 = vmatpush2.msra.mxu0 0.0
    %1397 = vmatprep.subr.mxu0 0.0
    %1398 = vmatpush2.msra.mxu0 0.0
    %1399 = vmatprep.subr.mxu0 0.0
    %1400 = vmatpush2.msra.mxu0 0.0
    %1401 = vmatprep.subr.mxu0 0.0
    %1402 = vmatpush2.msra.mxu0 0.0
    %1403 = vmatprep.subr.mxu0 0.0
    %1404 = vmatpush2.msra.mxu0 0.0
    %1405 = vmatprep.subr.mxu0 0.0
    %1406 = vmatpush2.msra.mxu0 0.0
    %1407 = vmatprep.mubr.f32.mxu0 0.0
    %1408 = vmatmul.mubr.f32.gmra.mxu0 %v1261
    %v1409 = vpop.f32.mrf.mxu0
    %v1410 = vadd.f32 %v1342, %v1409
    %v1411 = vpop.f32.mrf.mxu0
    %1412 = vdwg.mxu0
    %v1413 = vld [vmem:[#allocation2 + $0x20] sm:$0xff]
    %v1414 = vadd.f32 %v1410, %v1413
    %v1415 = vtanh.pop %v1414
    %1416 = vst [vmem:[%s12 + $0x20] sm:$0xff] %v1415
    %v1417 = vmul.f32 %v1415, %v1415
    %v1418 = vld [vmem:[%s9 + $0x28] sm:$0xff]
    %1419 = vmatprep.subr.mxu0 0.0
    %1420 = vmatpush1.msra.mxu0 %v647
    %1421 = vmatprep.subr.mxu0 0.0
    %1422 = vmatpush1.msra.mxu0 %v646
    %1423 = vmatprep.subr.mxu0 0.0
    %1424 = vmatpush1.msra.mxu0 %v645
    %1425 = vmatprep.subr.mxu0 0.0
    %1426 = vmatpush1.msra.mxu0 %v644
    %1427 = vmatprep.subr.mxu0 0.0
    %1428 = vmatpush1.msra.mxu0 %v643
    %1429 = vmatprep.subr.mxu0 0.0
    %1430 = vmatpush1.msra.mxu0 %v642
    %1431 = vmatprep.subr.mxu0 0.0
    %1432 = vmatpush1.msra.mxu0 %v641
    %1433 = vmatprep.subr.mxu0 0.0
    %1434 = vmatpush1.msra.mxu0 %v640
    %1435 = vmatprep.subr.mxu0 0.0
    %1436 = vmatpush1.msra.mxu0 %v639
    %1437 = vmatprep.subr.mxu0 0.0
    %1438 = vmatpush1.msra.mxu0 %v638
    %1439 = vmatprep.subr.mxu0 0.0
    %1440 = vmatpush1.msra.mxu0 %v637
    %1441 = vmatprep.subr.mxu0 0.0
    %1442 = vmatpush1.msra.mxu0 %v636
    %1443 = vmatprep.subr.mxu0 0.0
    %1444 = vmatpush1.msra.mxu0 %v635
    %1445 = vmatprep.subr.mxu0 0.0
    %1446 = vmatpush1.msra.mxu0 %v634
    %1447 = vmatprep.subr.mxu0 0.0
    %1448 = vmatpush1.msra.mxu0 %v633
    %1449 = vmatprep.subr.mxu0 0.0
    %1450 = vmatpush1.msra.mxu0 %v632
    %1451 = vmatprep.subr.mxu0 0.0
    %1452 = vmatpush2.msra.mxu0 0.0
    %1453 = vmatprep.subr.mxu0 0.0
    %1454 = vmatpush2.msra.mxu0 0.0
    %1455 = vmatprep.subr.mxu0 0.0
    %1456 = vmatpush2.msra.mxu0 0.0
    %1457 = vmatprep.subr.mxu0 0.0
    %1458 = vmatpush2.msra.mxu0 0.0
    %1459 = vmatprep.subr.mxu0 0.0
    %1460 = vmatpush2.msra.mxu0 0.0
    %1461 = vmatprep.subr.mxu0 0.0
    %1462 = vmatpush2.msra.mxu0 0.0
    %1463 = vmatprep.subr.mxu0 0.0
    %1464 = vmatpush2.msra.mxu0 0.0
    %1465 = vmatprep.subr.mxu0 0.0
    %1466 = vmatpush2.msra.mxu0 0.0
    %1467 = vmatprep.subr.mxu0 0.0
    %1468 = vmatpush2.msra.mxu0 0.0
    %1469 = vmatprep.subr.mxu0 0.0
    %1470 = vmatpush2.msra.mxu0 0.0
    %1471 = vmatprep.subr.mxu0 0.0
    %1472 = vmatpush2.msra.mxu0 0.0
    %1473 = vmatprep.subr.mxu0 0.0
    %1474 = vmatpush2.msra.mxu0 0.0
    %1475 = vmatprep.subr.mxu0 0.0
    %1476 = vmatpush2.msra.mxu0 0.0
    %1477 = vmatprep.subr.mxu0 0.0
    %1478 = vmatpush2.msra.mxu0 0.0
    %1479 = vmatprep.subr.mxu0 0.0
    %1480 = vmatpush2.msra.mxu0 0.0
    %1481 = vmatprep.subr.mxu0 0.0
    %1482 = vmatpush2.msra.mxu0 0.0
    %1483 = vmatprep.mubr.f32.mxu0 0.0
    %1484 = vmatmul.mubr.f32.gmra.mxu0 %v1417
    %v1485 = vpop.f32.mrf.mxu0
    %v1486 = vadd.f32 1e-10, %v1485
    %v1487 = vpop.f32.mrf.mxu0
    %1488 = vdwg.mxu0
    %v1489 = vrsqrt.pop %v1486
    %v1490 = vmul.f32 %v1486, %v1489
    %vm1491 = vcmp.eq.f32.partialorder %v1486, inf
    %v1492 = vsel %vm1491, %v1486, %v1490
    %vm1493 = vcmp.eq.f32.partialorder %v1486, 0.0
    %v1494 = vand.u32 %v1486, 2147483648
    %v1495 = vsel %vm1493, %v1494, %v1492
    %v1496 = vmul.f32 %v1418, %v1495
    %1497 = vmatprep.subr.mxu0 0.0
    %1498 = vmatpush1.msra.mxu0 %v631
    %1499 = vmatprep.subr.mxu0 0.0
    %1500 = vmatpush1.msra.mxu0 %v630
    %1501 = vmatprep.subr.mxu0 0.0
    %1502 = vmatpush1.msra.mxu0 %v629
    %1503 = vmatprep.subr.mxu0 0.0
    %1504 = vmatpush1.msra.mxu0 %v628
    %1505 = vmatprep.subr.mxu0 0.0
    %1506 = vmatpush1.msra.mxu0 %v627
    %1507 = vmatprep.subr.mxu0 0.0
    %1508 = vmatpush1.msra.mxu0 %v626
    %1509 = vmatprep.subr.mxu0 0.0
    %1510 = vmatpush1.msra.mxu0 %v625
    %1511 = vmatprep.subr.mxu0 0.0
    %1512 = vmatpush1.msra.mxu0 %v624
    %1513 = vmatprep.subr.mxu0 0.0
    %1514 = vmatpush1.msra.mxu0 %v623
    %1515 = vmatprep.subr.mxu0 0.0
    %1516 = vmatpush1.msra.mxu0 %v622
    %1517 = vmatprep.subr.mxu0 0.0
    %1518 = vmatpush1.msra.mxu0 %v621
    %1519 = vmatprep.subr.mxu0 0.0
    %1520 = vmatpush1.msra.mxu0 %v620
    %1521 = vmatprep.subr.mxu0 0.0
    %1522 = vmatpush1.msra.mxu0 %v619
    %1523 = vmatprep.subr.mxu0 0.0
    %1524 = vmatpush1.msra.mxu0 %v618
    %1525 = vmatprep.subr.mxu0 0.0
    %1526 = vmatpush1.msra.mxu0 %v617
    %1527 = vmatprep.subr.mxu0 0.0
    %1528 = vmatpush1.msra.mxu0 %v616
    %1529 = vmatprep.subr.mxu0 0.0
    %1530 = vmatpush2.msra.mxu0 0.0
    %1531 = vmatprep.subr.mxu0 0.0
    %1532 = vmatpush2.msra.mxu0 0.0
    %1533 = vmatprep.subr.mxu0 0.0
    %1534 = vmatpush2.msra.mxu0 0.0
    %1535 = vmatprep.subr.mxu0 0.0
    %1536 = vmatpush2.msra.mxu0 0.0
    %1537 = vmatprep.subr.mxu0 0.0
    %1538 = vmatpush2.msra.mxu0 0.0
    %1539 = vmatprep.subr.mxu0 0.0
    %1540 = vmatpush2.msra.mxu0 0.0
    %1541 = vmatprep.subr.mxu0 0.0
    %1542 = vmatpush2.msra.mxu0 0.0
    %1543 = vmatprep.subr.mxu0 0.0
    %1544 = vmatpush2.msra.mxu0 0.0
    %1545 = vmatprep.subr.mxu0 0.0
    %1546 = vmatpush2.msra.mxu0 0.0
    %1547 = vmatprep.subr.mxu0 0.0
    %1548 = vmatpush2.msra.mxu0 0.0
    %1549 = vmatprep.subr.mxu0 0.0
    %1550 = vmatpush2.msra.mxu0 0.0
    %1551 = vmatprep.subr.mxu0 0.0
    %1552 = vmatpush2.msra.mxu0 0.0
    %1553 = vmatprep.subr.mxu0 0.0
    %1554 = vmatpush2.msra.mxu0 0.0
    %1555 = vmatprep.subr.mxu0 0.0
    %1556 = vmatpush2.msra.mxu0 0.0
    %1557 = vmatprep.subr.mxu0 0.0
    %1558 = vmatpush2.msra.mxu0 0.0
    %1559 = vmatprep.subr.mxu0 0.0
    %1560 = vmatpush2.msra.mxu0 0.0
    %1561 = vmatprep.mubr.f32.mxu0 0.0
    %1562 = vmatmul.mubr.f32.gmra.mxu0 %v1415
    %v1563 = vpop.f32.mrf.mxu0
    %v1564 = vadd.f32 %v1496, %v1563
    %v1565 = vpop.f32.mrf.mxu0
    %1566 = vdwg.mxu0
    %v1567 = vld [vmem:[#allocation2 + $0x28] sm:$0xff]
    %v1568 = vadd.f32 %v1564, %v1567
    %v1569 = vtanh.pop %v1568
    %1570 = vst [vmem:[%s12 + $0x28] sm:$0xff] %v1569
    %v1571 = vmul.f32 %v1569, %v1569
    %v1572 = vld [vmem:[%s9 + $0x30] sm:$0xff]
    %1573 = vmatprep.subr.mxu0 0.0
    %1574 = vmatpush1.msra.mxu0 %v647
    %1575 = vmatprep.subr.mxu0 0.0
    %1576 = vmatpush1.msra.mxu0 %v646
    %1577 = vmatprep.subr.mxu0 0.0
    %1578 = vmatpush1.msra.mxu0 %v645
    %1579 = vmatprep.subr.mxu0 0.0
    %1580 = vmatpush1.msra.mxu0 %v644
    %1581 = vmatprep.subr.mxu0 0.0
    %1582 = vmatpush1.msra.mxu0 %v643
    %1583 = vmatprep.subr.mxu0 0.0
    %1584 = vmatpush1.msra.mxu0 %v642
    %1585 = vmatprep.subr.mxu0 0.0
    %1586 = vmatpush1.msra.mxu0 %v641
    %1587 = vmatprep.subr.mxu0 0.0
    %1588 = vmatpush1.msra.mxu0 %v640
    %1589 = vmatprep.subr.mxu0 0.0
    %1590 = vmatpush1.msra.mxu0 %v639
    %1591 = vmatprep.subr.mxu0 0.0
    %1592 = vmatpush1.msra.mxu0 %v638
    %1593 = vmatprep.subr.mxu0 0.0
    %1594 = vmatpush1.msra.mxu0 %v637
    %1595 = vmatprep.subr.mxu0 0.0
    %1596 = vmatpush1.msra.mxu0 %v636
    %1597 = vmatprep.subr.mxu0 0.0
    %1598 = vmatpush1.msra.mxu0 %v635
    %1599 = vmatprep.subr.mxu0 0.0
    %1600 = vmatpush1.msra.mxu0 %v634
    %1601 = vmatprep.subr.mxu0 0.0
    %1602 = vmatpush1.msra.mxu0 %v633
    %1603 = vmatprep.subr.mxu0 0.0
    %1604 = vmatpush1.msra.mxu0 %v632
    %1605 = vmatprep.subr.mxu0 0.0
    %1606 = vmatpush2.msra.mxu0 0.0
    %1607 = vmatprep.subr.mxu0 0.0
    %1608 = vmatpush2.msra.mxu0 0.0
    %1609 = vmatprep.subr.mxu0 0.0
    %1610 = vmatpush2.msra.mxu0 0.0
    %1611 = vmatprep.subr.mxu0 0.0
    %1612 = vmatpush2.msra.mxu0 0.0
    %1613 = vmatprep.subr.mxu0 0.0
    %1614 = vmatpush2.msra.mxu0 0.0
    %1615 = vmatprep.subr.mxu0 0.0
    %1616 = vmatpush2.msra.mxu0 0.0
    %1617 = vmatprep.subr.mxu0 0.0
    %1618 = vmatpush2.msra.mxu0 0.0
    %1619 = vmatprep.subr.mxu0 0.0
    %1620 = vmatpush2.msra.mxu0 0.0
    %1621 = vmatprep.subr.mxu0 0.0
    %1622 = vmatpush2.msra.mxu0 0.0
    %1623 = vmatprep.subr.mxu0 0.0
    %1624 = vmatpush2.msra.mxu0 0.0
    %1625 = vmatprep.subr.mxu0 0.0
    %1626 = vmatpush2.msra.mxu0 0.0
    %1627 = vmatprep.subr.mxu0 0.0
    %1628 = vmatpush2.msra.mxu0 0.0
    %1629 = vmatprep.subr.mxu0 0.0
    %1630 = vmatpush2.msra.mxu0 0.0
    %1631 = vmatprep.subr.mxu0 0.0
    %1632 = vmatpush2.msra.mxu0 0.0
    %1633 = vmatprep.subr.mxu0 0.0
    %1634 = vmatpush2.msra.mxu0 0.0
    %1635 = vmatprep.subr.mxu0 0.0
    %1636 = vmatpush2.msra.mxu0 0.0
    %1637 = vmatprep.mubr.f32.mxu0 0.0
    %1638 = vmatmul.mubr.f32.gmra.mxu0 %v1571
    %v1639 = vpop.f32.mrf.mxu0
    %v1640 = vadd.f32 1e-10, %v1639
    %v1641 = vpop.f32.mrf.mxu0
    %1642 = vdwg.mxu0
    %v1643 = vrsqrt.pop %v1640
    %v1644 = vmul.f32 %v1640, %v1643
    %vm1645 = vcmp.eq.f32.partialorder %v1640, inf
    %v1646 = vsel %vm1645, %v1640, %v1644
    %vm1647 = vcmp.eq.f32.partialorder %v1640, 0.0
    %v1648 = vand.u32 %v1640, 2147483648
    %v1649 = vsel %vm1647, %v1648, %v1646
    %v1650 = vmul.f32 %v1572, %v1649
    %1651 = vmatprep.subr.mxu0 0.0
    %1652 = vmatpush1.msra.mxu0 %v631
    %1653 = vmatprep.subr.mxu0 0.0
    %1654 = vmatpush1.msra.mxu0 %v630
    %1655 = vmatprep.subr.mxu0 0.0
    %1656 = vmatpush1.msra.mxu0 %v629
    %1657 = vmatprep.subr.mxu0 0.0
    %1658 = vmatpush1.msra.mxu0 %v628
    %1659 = vmatprep.subr.mxu0 0.0
    %1660 = vmatpush1.msra.mxu0 %v627
    %1661 = vmatprep.subr.mxu0 0.0
    %1662 = vmatpush1.msra.mxu0 %v626
    %1663 = vmatprep.subr.mxu0 0.0
    %1664 = vmatpush1.msra.mxu0 %v625
    %1665 = vmatprep.subr.mxu0 0.0
    %1666 = vmatpush1.msra.mxu0 %v624
    %1667 = vmatprep.subr.mxu0 0.0
    %1668 = vmatpush1.msra.mxu0 %v623
    %1669 = vmatprep.subr.mxu0 0.0
    %1670 = vmatpush1.msra.mxu0 %v622
    %1671 = vmatprep.subr.mxu0 0.0
    %1672 = vmatpush1.msra.mxu0 %v621
    %1673 = vmatprep.subr.mxu0 0.0
    %1674 = vmatpush1.msra.mxu0 %v620
    %1675 = vmatprep.subr.mxu0 0.0
    %1676 = vmatpush1.msra.mxu0 %v619
    %1677 = vmatprep.subr.mxu0 0.0
    %1678 = vmatpush1.msra.mxu0 %v618
    %1679 = vmatprep.subr.mxu0 0.0
    %1680 = vmatpush1.msra.mxu0 %v617
    %1681 = vmatprep.subr.mxu0 0.0
    %1682 = vmatpush1.msra.mxu0 %v616
    %1683 = vmatprep.subr.mxu0 0.0
    %1684 = vmatpush2.msra.mxu0 0.0
    %1685 = vmatprep.subr.mxu0 0.0
    %1686 = vmatpush2.msra.mxu0 0.0
    %1687 = vmatprep.subr.mxu0 0.0
    %1688 = vmatpush2.msra.mxu0 0.0
    %1689 = vmatprep.subr.mxu0 0.0
    %1690 = vmatpush2.msra.mxu0 0.0
    %1691 = vmatprep.subr.mxu0 0.0
    %1692 = vmatpush2.msra.mxu0 0.0
    %1693 = vmatprep.subr.mxu0 0.0
    %1694 = vmatpush2.msra.mxu0 0.0
    %1695 = vmatprep.subr.mxu0 0.0
    %1696 = vmatpush2.msra.mxu0 0.0
    %1697 = vmatprep.subr.mxu0 0.0
    %1698 = vmatpush2.msra.mxu0 0.0
    %1699 = vmatprep.subr.mxu0 0.0
    %1700 = vmatpush2.msra.mxu0 0.0
    %1701 = vmatprep.subr.mxu0 0.0
    %1702 = vmatpush2.msra.mxu0 0.0
    %1703 = vmatprep.subr.mxu0 0.0
    %1704 = vmatpush2.msra.mxu0 0.0
    %1705 = vmatprep.subr.mxu0 0.0
    %1706 = vmatpush2.msra.mxu0 0.0
    %1707 = vmatprep.subr.mxu0 0.0
    %1708 = vmatpush2.msra.mxu0 0.0
    %1709 = vmatprep.subr.mxu0 0.0
    %1710 = vmatpush2.msra.mxu0 0.0
    %1711 = vmatprep.subr.mxu0 0.0
    %1712 = vmatpush2.msra.mxu0 0.0
    %1713 = vmatprep.subr.mxu0 0.0
    %1714 = vmatpush2.msra.mxu0 0.0
    %1715 = vmatprep.mubr.f32.mxu0 0.0
    %1716 = vmatmul.mubr.f32.gmra.mxu0 %v1569
    %v1717 = vpop.f32.mrf.mxu0
    %v1718 = vadd.f32 %v1650, %v1717
    %v1719 = vpop.f32.mrf.mxu0
    %1720 = vdwg.mxu0
    %v1721 = vld [vmem:[#allocation2 + $0x30] sm:$0xff]
    %v1722 = vadd.f32 %v1718, %v1721
    %v1723 = vtanh.pop %v1722
    %1724 = vst [vmem:[%s12 + $0x30] sm:$0xff] %v1723
    %v1725 = vmul.f32 %v1723, %v1723
    %v1726 = vld [vmem:[%s9 + $0x38] sm:$0xff]
    %1727 = vmatprep.subr.mxu0 0.0
    %1728 = vmatpush1.msra.mxu0 %v647
    %1729 = vmatprep.subr.mxu0 0.0
    %1730 = vmatpush1.msra.mxu0 %v646
    %1731 = vmatprep.subr.mxu0 0.0
    %1732 = vmatpush1.msra.mxu0 %v645
    %1733 = vmatprep.subr.mxu0 0.0
    %1734 = vmatpush1.msra.mxu0 %v644
    %1735 = vmatprep.subr.mxu0 0.0
    %1736 = vmatpush1.msra.mxu0 %v643
    %1737 = vmatprep.subr.mxu0 0.0
    %1738 = vmatpush1.msra.mxu0 %v642
    %1739 = vmatprep.subr.mxu0 0.0
    %1740 = vmatpush1.msra.mxu0 %v641
    %1741 = vmatprep.subr.mxu0 0.0
    %1742 = vmatpush1.msra.mxu0 %v640
    %1743 = vmatprep.subr.mxu0 0.0
    %1744 = vmatpush1.msra.mxu0 %v639
    %1745 = vmatprep.subr.mxu0 0.0
    %1746 = vmatpush1.msra.mxu0 %v638
    %1747 = vmatprep.subr.mxu0 0.0
    %1748 = vmatpush1.msra.mxu0 %v637
    %1749 = vmatprep.subr.mxu0 0.0
    %1750 = vmatpush1.msra.mxu0 %v636
    %1751 = vmatprep.subr.mxu0 0.0
    %1752 = vmatpush1.msra.mxu0 %v635
    %1753 = vmatprep.subr.mxu0 0.0
    %1754 = vmatpush1.msra.mxu0 %v634
    %1755 = vmatprep.subr.mxu0 0.0
    %1756 = vmatpush1.msra.mxu0 %v633
    %1757 = vmatprep.subr.mxu0 0.0
    %1758 = vmatpush1.msra.mxu0 %v632
    %1759 = vmatprep.subr.mxu0 0.0
    %1760 = vmatpush2.msra.mxu0 0.0
    %1761 = vmatprep.subr.mxu0 0.0
    %1762 = vmatpush2.msra.mxu0 0.0
    %1763 = vmatprep.subr.mxu0 0.0
    %1764 = vmatpush2.msra.mxu0 0.0
    %1765 = vmatprep.subr.mxu0 0.0
    %1766 = vmatpush2.msra.mxu0 0.0
    %1767 = vmatprep.subr.mxu0 0.0
    %1768 = vmatpush2.msra.mxu0 0.0
    %1769 = vmatprep.subr.mxu0 0.0
    %1770 = vmatpush2.msra.mxu0 0.0
    %1771 = vmatprep.subr.mxu0 0.0
    %1772 = vmatpush2.msra.mxu0 0.0
    %1773 = vmatprep.subr.mxu0 0.0
    %1774 = vmatpush2.msra.mxu0 0.0
    %1775 = vmatprep.subr.mxu0 0.0
    %1776 = vmatpush2.msra.mxu0 0.0
    %1777 = vmatprep.subr.mxu0 0.0
    %1778 = vmatpush2.msra.mxu0 0.0
    %1779 = vmatprep.subr.mxu0 0.0
    %1780 = vmatpush2.msra.mxu0 0.0
    %1781 = vmatprep.subr.mxu0 0.0
    %1782 = vmatpush2.msra.mxu0 0.0
    %1783 = vmatprep.subr.mxu0 0.0
    %1784 = vmatpush2.msra.mxu0 0.0
    %1785 = vmatprep.subr.mxu0 0.0
    %1786 = vmatpush2.msra.mxu0 0.0
    %1787 = vmatprep.subr.mxu0 0.0
    %1788 = vmatpush2.msra.mxu0 0.0
    %1789 = vmatprep.subr.mxu0 0.0
    %1790 = vmatpush2.msra.mxu0 0.0
    %1791 = vmatprep.mubr.f32.mxu0 0.0
    %1792 = vmatmul.mubr.f32.gmra.mxu0 %v1725
    %v1793 = vpop.f32.mrf.mxu0
    %v1794 = vadd.f32 1e-10, %v1793
    %v1795 = vpop.f32.mrf.mxu0
    %1796 = vdwg.mxu0
    %v1797 = vrsqrt.pop %v1794
    %v1798 = vmul.f32 %v1794, %v1797
    %vm1799 = vcmp.eq.f32.partialorder %v1794, inf
    %v1800 = vsel %vm1799, %v1794, %v1798
    %vm1801 = vcmp.eq.f32.partialorder %v1794, 0.0
    %v1802 = vand.u32 %v1794, 2147483648
    %v1803 = vsel %vm1801, %v1802, %v1800
    %v1804 = vmul.f32 %v1726, %v1803
    %1805 = vmatprep.subr.mxu0 0.0
    %1806 = vmatpush1.msra.mxu0 %v631
    %1807 = vmatprep.subr.mxu0 0.0
    %1808 = vmatpush1.msra.mxu0 %v630
    %1809 = vmatprep.subr.mxu0 0.0
    %1810 = vmatpush1.msra.mxu0 %v629
    %1811 = vmatprep.subr.mxu0 0.0
    %1812 = vmatpush1.msra.mxu0 %v628
    %1813 = vmatprep.subr.mxu0 0.0
    %1814 = vmatpush1.msra.mxu0 %v627
    %1815 = vmatprep.subr.mxu0 0.0
    %1816 = vmatpush1.msra.mxu0 %v626
    %1817 = vmatprep.subr.mxu0 0.0
    %1818 = vmatpush1.msra.mxu0 %v625
    %1819 = vmatprep.subr.mxu0 0.0
    %1820 = vmatpush1.msra.mxu0 %v624
    %1821 = vmatprep.subr.mxu0 0.0
    %1822 = vmatpush1.msra.mxu0 %v623
    %1823 = vmatprep.subr.mxu0 0.0
    %1824 = vmatpush1.msra.mxu0 %v622
    %1825 = vmatprep.subr.mxu0 0.0
    %1826 = vmatpush1.msra.mxu0 %v621
    %1827 = vmatprep.subr.mxu0 0.0
    %1828 = vmatpush1.msra.mxu0 %v620
    %1829 = vmatprep.subr.mxu0 0.0
    %1830 = vmatpush1.msra.mxu0 %v619
    %1831 = vmatprep.subr.mxu0 0.0
    %1832 = vmatpush1.msra.mxu0 %v618
    %1833 = vmatprep.subr.mxu0 0.0
    %1834 = vmatpush1.msra.mxu0 %v617
    %1835 = vmatprep.subr.mxu0 0.0
    %1836 = vmatpush1.msra.mxu0 %v616
    %1837 = vmatprep.subr.mxu0 0.0
    %1838 = vmatpush2.msra.mxu0 0.0
    %1839 = vmatprep.subr.mxu0 0.0
    %1840 = vmatpush2.msra.mxu0 0.0
    %1841 = vmatprep.subr.mxu0 0.0
    %1842 = vmatpush2.msra.mxu0 0.0
    %1843 = vmatprep.subr.mxu0 0.0
    %1844 = vmatpush2.msra.mxu0 0.0
    %1845 = vmatprep.subr.mxu0 0.0
    %1846 = vmatpush2.msra.mxu0 0.0
    %1847 = vmatprep.subr.mxu0 0.0
    %1848 = vmatpush2.msra.mxu0 0.0
    %1849 = vmatprep.subr.mxu0 0.0
    %1850 = vmatpush2.msra.mxu0 0.0
    %1851 = vmatprep.subr.mxu0 0.0
    %1852 = vmatpush2.msra.mxu0 0.0
    %1853 = vmatprep.subr.mxu0 0.0
    %1854 = vmatpush2.msra.mxu0 0.0
    %1855 = vmatprep.subr.mxu0 0.0
    %1856 = vmatpush2.msra.mxu0 0.0
    %1857 = vmatprep.subr.mxu0 0.0
    %1858 = vmatpush2.msra.mxu0 0.0
    %1859 = vmatprep.subr.mxu0 0.0
    %1860 = vmatpush2.msra.mxu0 0.0
    %1861 = vmatprep.subr.mxu0 0.0
    %1862 = vmatpush2.msra.mxu0 0.0
    %1863 = vmatprep.subr.mxu0 0.0
    %1864 = vmatpush2.msra.mxu0 0.0
    %1865 = vmatprep.subr.mxu0 0.0
    %1866 = vmatpush2.msra.mxu0 0.0
    %1867 = vmatprep.subr.mxu0 0.0
    %1868 = vmatpush2.msra.mxu0 0.0
    %1869 = vmatprep.mubr.f32.mxu0 0.0
    %1870 = vmatmul.mubr.f32.gmra.mxu0 %v1723
    %v1871 = vpop.f32.mrf.mxu0
    %v1872 = vadd.f32 %v1804, %v1871
    %v1873 = vpop.f32.mrf.mxu0
    %1874 = vdwg.mxu0
    %v1875 = vld [vmem:[#allocation2 + $0x38] sm:$0xff]
    %v1876 = vadd.f32 %v1872, %v1875
    %v1877 = vtanh.pop %v1876
    %1878 = vst [vmem:[%s12 + $0x38] sm:$0xff] %v1877
    %v1879 = vld [vmem:[%s12] sm:$0xff]
    %v1880 = vld [vmem:[%s12 + $0x8] sm:$0xff]
    %v1881 = vld [vmem:[%s12 + $0x10] sm:$0xff]
    %v1882 = vld [vmem:[%s12 + $0x18] sm:$0xff]
    %v1883 = vld [vmem:[%s12 + $0x20] sm:$0xff]
    %v1884 = vld [vmem:[%s12 + $0x28] sm:$0xff]
    %v1885 = vld [vmem:[%s12 + $0x30] sm:$0xff]
    %v1886 = vld [vmem:[%s12 + $0x38] sm:$0xff]
    %v1887 = vld [vmem:[%s6] sm:$0xff]
    %v1888 = vld [vmem:[%s6 + $0x8] sm:$0xff]
    %v1889 = vld [vmem:[%s6 + $0x10] sm:$0xff]
    %v1890 = vld [vmem:[%s6 + $0x18] sm:$0xff]
    %v1891 = vld [vmem:[%s6 + $0x20] sm:$0xff]
    %v1892 = vld [vmem:[%s6 + $0x28] sm:$0xff]
    %v1893 = vld [vmem:[%s6 + $0x30] sm:$0xff]
    %v1894 = vld [vmem:[%s6 + $0x38] sm:$0xff]
    %v1895 = vld [vmem:[%s6 + $0x40] sm:$0xff]
    %v1896 = vld [vmem:[%s6 + $0x48] sm:$0xff]
    %v1897 = vld [vmem:[%s6 + $0x50] sm:$0xff]
    %v1898 = vld [vmem:[%s6 + $0x58] sm:$0xff]
    %v1899 = vld [vmem:[%s6 + $0x60] sm:$0xff]
    %v1900 = vld [vmem:[%s6 + $0x68] sm:$0xff]
    %v1901 = vld [vmem:[%s6 + $0x70] sm:$0xff]
    %v1902 = vld [vmem:[%s6 + $0x78] sm:$0xff]
    %v1903 = vld [vmem:[%s6 + $0x80] sm:$0xff]
    %v1904 = vld [vmem:[%s6 + $0x88] sm:$0xff]
    %v1905 = vld [vmem:[%s6 + $0x90] sm:$0xff]
    %v1906 = vld [vmem:[%s6 + $0x98] sm:$0xff]
    %v1907 = vld [vmem:[%s6 + $0xa0] sm:$0xff]
    %v1908 = vld [vmem:[%s6 + $0xa8] sm:$0xff]
    %v1909 = vld [vmem:[%s6 + $0xb0] sm:$0xff]
    %v1910 = vld [vmem:[%s6 + $0xb8] sm:$0xff]
    %v1911 = vld [vmem:[%s6 + $0xc0] sm:$0xff]
    %v1912 = vld [vmem:[%s6 + $0xc8] sm:$0xff]
    %v1913 = vld [vmem:[%s6 + $0xd0] sm:$0xff]
    %v1914 = vld [vmem:[%s6 + $0xd8] sm:$0xff]
    %v1915 = vld [vmem:[%s6 + $0xe0] sm:$0xff]
    %v1916 = vld [vmem:[%s6 + $0xe8] sm:$0xff]
    %v1917 = vld [vmem:[%s6 + $0xf0] sm:$0xff]
    %v1918 = vld [vmem:[%s6 + $0xf8] sm:$0xff]
    %v1919 = vmul.f32 %v1879, %v1879
    %v1920 = vmul.f32 %v1880, %v1880
    %v1921 = vmul.f32 %v1881, %v1881
    %v1922 = vmul.f32 %v1882, %v1882
    %v1923 = vmul.f32 %v1883, %v1883
    %v1924 = vmul.f32 %v1884, %v1884
    %v1925 = vmul.f32 %v1885, %v1885
    %v1926 = vmul.f32 %v1886, %v1886
    %v1927 = vld [vmem:[%s7] sm:$0xff]
    %v1928 = vld [vmem:[%s7 + $0x8] sm:$0xff]
    %v1929 = vld [vmem:[%s7 + $0x10] sm:$0xff]
    %v1930 = vld [vmem:[%s7 + $0x18] sm:$0xff]
    %v1931 = vld [vmem:[%s7 + $0x20] sm:$0xff]
    %v1932 = vld [vmem:[%s7 + $0x28] sm:$0xff]
    %v1933 = vld [vmem:[%s7 + $0x30] sm:$0xff]
    %v1934 = vld [vmem:[%s7 + $0x38] sm:$0xff]
    %v1935 = vld [vmem:[%s7 + $0x40] sm:$0xff]
    %v1936 = vld [vmem:[%s7 + $0x48] sm:$0xff]
    %v1937 = vld [vmem:[%s7 + $0x50] sm:$0xff]
    %v1938 = vld [vmem:[%s7 + $0x58] sm:$0xff]
    %v1939 = vld [vmem:[%s7 + $0x60] sm:$0xff]
    %v1940 = vld [vmem:[%s7 + $0x68] sm:$0xff]
    %v1941 = vld [vmem:[%s7 + $0x70] sm:$0xff]
    %v1942 = vld [vmem:[%s7 + $0x78] sm:$0xff]
    %v1943 = vld [vmem:[%s7 + $0x80] sm:$0xff]
    %v1944 = vld [vmem:[%s7 + $0x88] sm:$0xff]
    %v1945 = vld [vmem:[%s7 + $0x90] sm:$0xff]
    %v1946 = vld [vmem:[%s7 + $0x98] sm:$0xff]
    %v1947 = vld [vmem:[%s7 + $0xa0] sm:$0xff]
    %v1948 = vld [vmem:[%s7 + $0xa8] sm:$0xff]
    %v1949 = vld [vmem:[%s7 + $0xb0] sm:$0xff]
    %v1950 = vld [vmem:[%s7 + $0xb8] sm:$0xff]
    %v1951 = vld [vmem:[%s7 + $0xc0] sm:$0xff]
    %v1952 = vld [vmem:[%s7 + $0xc8] sm:$0xff]
    %v1953 = vld [vmem:[%s7 + $0xd0] sm:$0xff]
    %v1954 = vld [vmem:[%s7 + $0xd8] sm:$0xff]
    %v1955 = vld [vmem:[%s7 + $0xe0] sm:$0xff]
    %v1956 = vld [vmem:[%s7 + $0xe8] sm:$0xff]
    %v1957 = vld [vmem:[%s7 + $0xf0] sm:$0xff]
    %v1958 = vld [vmem:[%s7 + $0xf8] sm:$0xff]
    %v1959 = vld [vmem:[%s10] sm:$0xff]
    %v1960 = vld [vmem:[%s10 + $0x8] sm:$0xff]
    %v1961 = vld [vmem:[%s10 + $0x10] sm:$0xff]
    %v1962 = vld [vmem:[%s10 + $0x18] sm:$0xff]
    %v1963 = vld [vmem:[%s10 + $0x20] sm:$0xff]
    %v1964 = vld [vmem:[%s10 + $0x28] sm:$0xff]
    %v1965 = vld [vmem:[%s10 + $0x30] sm:$0xff]
    %v1966 = vld [vmem:[%s10 + $0x38] sm:$0xff]
    %v1967 = vld [vmem:[%s10 + $0x40] sm:$0xff]
    %v1968 = vld [vmem:[%s10 + $0x48] sm:$0xff]
    %v1969 = vld [vmem:[%s10 + $0x50] sm:$0xff]
    %v1970 = vld [vmem:[%s10 + $0x58] sm:$0xff]
    %v1971 = vld [vmem:[%s10 + $0x60] sm:$0xff]
    %v1972 = vld [vmem:[%s10 + $0x68] sm:$0xff]
    %v1973 = vld [vmem:[%s10 + $0x70] sm:$0xff]
    %v1974 = vld [vmem:[%s10 + $0x78] sm:$0xff]
    %1975 = vmatprep.subr.mxu0 %v1958
    %1976 = vmatpush1.msra.mxu0 %v1957
    %1977 = vmatprep.subr.mxu0 %v1956
    %1978 = vmatpush1.msra.mxu0 %v1955
    %1979 = vmatprep.subr.mxu0 %v1954
    %1980 = vmatpush1.msra.mxu0 %v1953
    %1981 = vmatprep.subr.mxu0 %v1952
    %1982 = vmatpush1.msra.mxu0 %v1951
    %1983 = vmatprep.subr.mxu0 %v1950
    %1984 = vmatpush1.msra.mxu0 %v1949
    %1985 = vmatprep.subr.mxu0 %v1948
    %1986 = vmatpush1.msra.mxu0 %v1947
    %1987 = vmatprep.subr.mxu0 %v1946
    %1988 = vmatpush1.msra.mxu0 %v1945
    %1989 = vmatprep.subr.mxu0 %v1944
    %1990 = vmatpush1.msra.mxu0 %v1943
    %1991 = vmatprep.subr.mxu0 %v1942
    %1992 = vmatpush1.msra.mxu0 %v1941
    %1993 = vmatprep.subr.mxu0 %v1940
    %1994 = vmatpush1.msra.mxu0 %v1939
    %1995 = vmatprep.subr.mxu0 %v1938
    %1996 = vmatpush1.msra.mxu0 %v1937
    %1997 = vmatprep.subr.mxu0 %v1936
    %1998 = vmatpush1.msra.mxu0 %v1935
    %1999 = vmatprep.subr.mxu0 %v1934
    %2000 = vmatpush1.msra.mxu0 %v1933
    %2001 = vmatprep.subr.mxu0 %v1932
    %2002 = vmatpush1.msra.mxu0 %v1931
    %2003 = vmatprep.subr.mxu0 %v1930
    %2004 = vmatpush1.msra.mxu0 %v1929
    %2005 = vmatprep.subr.mxu0 %v1928
    %2006 = vmatpush1.msra.mxu0 %v1927
    %2007 = vmatprep.subr.mxu0 0.0
    %2008 = vmatpush2.msra.mxu0 0.0
    %2009 = vmatprep.subr.mxu0 0.0
    %2010 = vmatpush2.msra.mxu0 0.0
    %2011 = vmatprep.subr.mxu0 0.0
    %2012 = vmatpush2.msra.mxu0 0.0
    %2013 = vmatprep.subr.mxu0 0.0
    %2014 = vmatpush2.msra.mxu0 0.0
    %2015 = vmatprep.subr.mxu0 0.0
    %2016 = vmatpush2.msra.mxu0 0.0
    %2017 = vmatprep.subr.mxu0 0.0
    %2018 = vmatpush2.msra.mxu0 0.0
    %2019 = vmatprep.subr.mxu0 0.0
    %2020 = vmatpush2.msra.mxu0 0.0
    %2021 = vmatprep.subr.mxu0 0.0
    %2022 = vmatpush2.msra.mxu0 0.0
    %2023 = vmatprep.subr.mxu0 0.0
    %2024 = vmatpush2.msra.mxu0 0.0
    %2025 = vmatprep.subr.mxu0 0.0
    %2026 = vmatpush2.msra.mxu0 0.0
    %2027 = vmatprep.subr.mxu0 0.0
    %2028 = vmatpush2.msra.mxu0 0.0
    %2029 = vmatprep.subr.mxu0 0.0
    %2030 = vmatpush2.msra.mxu0 0.0
    %2031 = vmatprep.subr.mxu0 0.0
    %2032 = vmatpush2.msra.mxu0 0.0
    %2033 = vmatprep.subr.mxu0 0.0
    %2034 = vmatpush2.msra.mxu0 0.0
    %2035 = vmatprep.subr.mxu0 0.0
    %2036 = vmatpush2.msra.mxu0 0.0
    %2037 = vmatprep.subr.mxu0 0.0
    %2038 = vmatpush2.msra.mxu0 0.0
    %2039 = vmatprep.mubr.f32.mxu0 0.0
    %2040 = vmatmul.mubr.f32.gmra.mxu0 %v1919
    %v2041 = vpop.f32.mrf.mxu0
    %v2042 = vadd.f32 1e-10, %v2041
    %v2043 = vpop.f32.mrf.mxu0
    %v2044 = vadd.f32 1e-10, %v2043
    %2045 = vmatprep.mubr.f32.mxu0 0.0
    %2046 = vmatmul.mubr.f32.gmra.mxu0 %v1920
    %v2047 = vpop.f32.mrf.mxu0
    %v2048 = vadd.f32 1e-10, %v2047
    %v2049 = vpop.f32.mrf.mxu0
    %v2050 = vadd.f32 1e-10, %v2049
    %2051 = vmatprep.mubr.f32.mxu0 0.0
    %2052 = vmatmul.mubr.f32.gmra.mxu0 %v1921
    %v2053 = vpop.f32.mrf.mxu0
    %v2054 = vadd.f32 1e-10, %v2053
    %v2055 = vpop.f32.mrf.mxu0
    %v2056 = vadd.f32 1e-10, %v2055
    %2057 = vmatprep.mubr.f32.mxu0 0.0
    %2058 = vmatmul.mubr.f32.gmra.mxu0 %v1922
    %v2059 = vpop.f32.mrf.mxu0
    %v2060 = vadd.f32 1e-10, %v2059
    %v2061 = vpop.f32.mrf.mxu0
    %v2062 = vadd.f32 1e-10, %v2061
    %2063 = vmatprep.mubr.f32.mxu0 0.0
    %2064 = vmatmul.mubr.f32.gmra.mxu0 %v1923
    %v2065 = vpop.f32.mrf.mxu0
    %v2066 = vadd.f32 1e-10, %v2065
    %v2067 = vpop.f32.mrf.mxu0
    %v2068 = vadd.f32 1e-10, %v2067
    %2069 = vmatprep.mubr.f32.mxu0 0.0
    %2070 = vmatmul.mubr.f32.gmra.mxu0 %v1924
    %v2071 = vpop.f32.mrf.mxu0
    %v2072 = vadd.f32 1e-10, %v2071
    %v2073 = vpop.f32.mrf.mxu0
    %v2074 = vadd.f32 1e-10, %v2073
    %2075 = vmatprep.mubr.f32.mxu0 0.0
    %2076 = vmatmul.mubr.f32.gmra.mxu0 %v1925
    %v2077 = vpop.f32.mrf.mxu0
    %v2078 = vadd.f32 1e-10, %v2077
    %v2079 = vpop.f32.mrf.mxu0
    %v2080 = vadd.f32 1e-10, %v2079
    %2081 = vmatprep.mubr.f32.mxu0 0.0
    %2082 = vmatmul.mubr.f32.gmra.mxu0 %v1926
    %v2083 = vpop.f32.mrf.mxu0
    %v2084 = vadd.f32 1e-10, %v2083
    %v2085 = vpop.f32.mrf.mxu0
    %v2086 = vadd.f32 1e-10, %v2085
    %2087 = vdwg.mxu0
    %v2088 = vrsqrt.pop %v2042
    %v2089 = vmul.f32 %v2042, %v2088
    %vm2090 = vcmp.eq.f32.partialorder %v2042, inf
    %v2091 = vsel %vm2090, %v2042, %v2089
    %vm2092 = vcmp.eq.f32.partialorder %v2042, 0.0
    %v2093 = vand.u32 %v2042, 2147483648
    %v2094 = vsel %vm2092, %v2093, %v2091
    %v2095 = vrsqrt.pop %v2044
    %v2096 = vmul.f32 %v2044, %v2095
    %vm2097 = vcmp.eq.f32.partialorder %v2044, inf
    %v2098 = vsel %vm2097, %v2044, %v2096
    %vm2099 = vcmp.eq.f32.partialorder %v2044, 0.0
    %v2100 = vand.u32 %v2044, 2147483648
    %v2101 = vsel %vm2099, %v2100, %v2098
    %v2102 = vrsqrt.pop %v2048
    %v2103 = vmul.f32 %v2048, %v2102
    %vm2104 = vcmp.eq.f32.partialorder %v2048, inf
    %v2105 = vsel %vm2104, %v2048, %v2103
    %vm2106 = vcmp.eq.f32.partialorder %v2048, 0.0
    %v2107 = vand.u32 %v2048, 2147483648
    %v2108 = vsel %vm2106, %v2107, %v2105
    %v2109 = vrsqrt.pop %v2050
    %v2110 = vmul.f32 %v2050, %v2109
    %vm2111 = vcmp.eq.f32.partialorder %v2050, inf
    %v2112 = vsel %vm2111, %v2050, %v2110
    %vm2113 = vcmp.eq.f32.partialorder %v2050, 0.0
    %v2114 = vand.u32 %v2050, 2147483648
    %v2115 = vsel %vm2113, %v2114, %v2112
    %v2116 = vrsqrt.pop %v2054
    %v2117 = vmul.f32 %v2054, %v2116
    %vm2118 = vcmp.eq.f32.partialorder %v2054, inf
    %v2119 = vsel %vm2118, %v2054, %v2117
    %vm2120 = vcmp.eq.f32.partialorder %v2054, 0.0
    %v2121 = vand.u32 %v2054, 2147483648
    %v2122 = vsel %vm2120, %v2121, %v2119
    %v2123 = vrsqrt.pop %v2056
    %v2124 = vmul.f32 %v2056, %v2123
    %vm2125 = vcmp.eq.f32.partialorder %v2056, inf
    %v2126 = vsel %vm2125, %v2056, %v2124
    %vm2127 = vcmp.eq.f32.partialorder %v2056, 0.0
    %v2128 = vand.u32 %v2056, 2147483648
    %v2129 = vsel %vm2127, %v2128, %v2126
    %v2130 = vrsqrt.pop %v2060
    %v2131 = vmul.f32 %v2060, %v2130
    %vm2132 = vcmp.eq.f32.partialorder %v2060, inf
    %v2133 = vsel %vm2132, %v2060, %v2131
    %vm2134 = vcmp.eq.f32.partialorder %v2060, 0.0
    %v2135 = vand.u32 %v2060, 2147483648
    %v2136 = vsel %vm2134, %v2135, %v2133
    %v2137 = vrsqrt.pop %v2062
    %v2138 = vmul.f32 %v2062, %v2137
    %vm2139 = vcmp.eq.f32.partialorder %v2062, inf
    %v2140 = vsel %vm2139, %v2062, %v2138
    %vm2141 = vcmp.eq.f32.partialorder %v2062, 0.0
    %v2142 = vand.u32 %v2062, 2147483648
    %v2143 = vsel %vm2141, %v2142, %v2140
    %v2144 = vrsqrt.pop %v2066
    %v2145 = vmul.f32 %v2066, %v2144
    %vm2146 = vcmp.eq.f32.partialorder %v2066, inf
    %v2147 = vsel %vm2146, %v2066, %v2145
    %vm2148 = vcmp.eq.f32.partialorder %v2066, 0.0
    %v2149 = vand.u32 %v2066, 2147483648
    %v2150 = vsel %vm2148, %v2149, %v2147
    %v2151 = vrsqrt.pop %v2068
    %v2152 = vmul.f32 %v2068, %v2151
    %vm2153 = vcmp.eq.f32.partialorder %v2068, inf
    %v2154 = vsel %vm2153, %v2068, %v2152
    %vm2155 = vcmp.eq.f32.partialorder %v2068, 0.0
    %v2156 = vand.u32 %v2068, 2147483648
    %v2157 = vsel %vm2155, %v2156, %v2154
    %v2158 = vrsqrt.pop %v2072
    %v2159 = vmul.f32 %v2072, %v2158
    %vm2160 = vcmp.eq.f32.partialorder %v2072, inf
    %v2161 = vsel %vm2160, %v2072, %v2159
    %vm2162 = vcmp.eq.f32.partialorder %v2072, 0.0
    %v2163 = vand.u32 %v2072, 2147483648
    %v2164 = vsel %vm2162, %v2163, %v2161
    %v2165 = vrsqrt.pop %v2074
    %v2166 = vmul.f32 %v2074, %v2165
    %vm2167 = vcmp.eq.f32.partialorder %v2074, inf
    %v2168 = vsel %vm2167, %v2074, %v2166
    %vm2169 = vcmp.eq.f32.partialorder %v2074, 0.0
    %v2170 = vand.u32 %v2074, 2147483648
    %v2171 = vsel %vm2169, %v2170, %v2168
    %v2172 = vrsqrt.pop %v2078
    %v2173 = vmul.f32 %v2078, %v2172
    %vm2174 = vcmp.eq.f32.partialorder %v2078, inf
    %v2175 = vsel %vm2174, %v2078, %v2173
    %vm2176 = vcmp.eq.f32.partialorder %v2078, 0.0
    %v2177 = vand.u32 %v2078, 2147483648
    %v2178 = vsel %vm2176, %v2177, %v2175
    %v2179 = vrsqrt.pop %v2080
    %v2180 = vmul.f32 %v2080, %v2179
    %vm2181 = vcmp.eq.f32.partialorder %v2080, inf
    %v2182 = vsel %vm2181, %v2080, %v2180
    %vm2183 = vcmp.eq.f32.partialorder %v2080, 0.0
    %v2184 = vand.u32 %v2080, 2147483648
    %v2185 = vsel %vm2183, %v2184, %v2182
    %v2186 = vrsqrt.pop %v2084
    %v2187 = vmul.f32 %v2084, %v2186
    %vm2188 = vcmp.eq.f32.partialorder %v2084, inf
    %v2189 = vsel %vm2188, %v2084, %v2187
    %vm2190 = vcmp.eq.f32.partialorder %v2084, 0.0
    %v2191 = vand.u32 %v2084, 2147483648
    %v2192 = vsel %vm2190, %v2191, %v2189
    %v2193 = vrsqrt.pop %v2086
    %v2194 = vmul.f32 %v2086, %v2193
    %vm2195 = vcmp.eq.f32.partialorder %v2086, inf
    %v2196 = vsel %vm2195, %v2086, %v2194
    %vm2197 = vcmp.eq.f32.partialorder %v2086, 0.0
    %v2198 = vand.u32 %v2086, 2147483648
    %v2199 = vsel %vm2197, %v2198, %v2196
    %v2200 = vmul.f32 %v1959, %v2094
    %v2201 = vmul.f32 %v1960, %v2101
    %v2202 = vmul.f32 %v1961, %v2108
    %v2203 = vmul.f32 %v1962, %v2115
    %v2204 = vmul.f32 %v1963, %v2122
    %v2205 = vmul.f32 %v1964, %v2129
    %v2206 = vmul.f32 %v1965, %v2136
    %v2207 = vmul.f32 %v1966, %v2143
    %v2208 = vmul.f32 %v1967, %v2150
    %v2209 = vmul.f32 %v1968, %v2157
    %v2210 = vmul.f32 %v1969, %v2164
    %v2211 = vmul.f32 %v1970, %v2171
    %v2212 = vmul.f32 %v1971, %v2178
    %v2213 = vmul.f32 %v1972, %v2185
    %v2214 = vmul.f32 %v1973, %v2192
    %v2215 = vmul.f32 %v1974, %v2199
    %2216 = vmatprep.subr.mxu0 %v1918
    %2217 = vmatpush1.msra.mxu0 %v1917
    %2218 = vmatprep.subr.mxu0 %v1916
    %2219 = vmatpush1.msra.mxu0 %v1915
    %2220 = vmatprep.subr.mxu0 %v1914
    %2221 = vmatpush1.msra.mxu0 %v1913
    %2222 = vmatprep.subr.mxu0 %v1912
    %2223 = vmatpush1.msra.mxu0 %v1911
    %2224 = vmatprep.subr.mxu0 %v1910
    %2225 = vmatpush1.msra.mxu0 %v1909
    %2226 = vmatprep.subr.mxu0 %v1908
    %2227 = vmatpush1.msra.mxu0 %v1907
    %2228 = vmatprep.subr.mxu0 %v1906
    %2229 = vmatpush1.msra.mxu0 %v1905
    %2230 = vmatprep.subr.mxu0 %v1904
    %2231 = vmatpush1.msra.mxu0 %v1903
    %2232 = vmatprep.subr.mxu0 %v1902
    %2233 = vmatpush1.msra.mxu0 %v1901
    %2234 = vmatprep.subr.mxu0 %v1900
    %2235 = vmatpush1.msra.mxu0 %v1899
    %2236 = vmatprep.subr.mxu0 %v1898
    %2237 = vmatpush1.msra.mxu0 %v1897
    %2238 = vmatprep.subr.mxu0 %v1896
    %2239 = vmatpush1.msra.mxu0 %v1895
    %2240 = vmatprep.subr.mxu0 %v1894
    %2241 = vmatpush1.msra.mxu0 %v1893
    %2242 = vmatprep.subr.mxu0 %v1892
    %2243 = vmatpush1.msra.mxu0 %v1891
    %2244 = vmatprep.subr.mxu0 %v1890
    %2245 = vmatpush1.msra.mxu0 %v1889
    %2246 = vmatprep.subr.mxu0 %v1888
    %2247 = vmatpush1.msra.mxu0 %v1887
    %2248 = vmatprep.subr.mxu0 0.0
    %2249 = vmatpush2.msra.mxu0 0.0
    %2250 = vmatprep.subr.mxu0 0.0
    %2251 = vmatpush2.msra.mxu0 0.0
    %2252 = vmatprep.subr.mxu0 0.0
    %2253 = vmatpush2.msra.mxu0 0.0
    %2254 = vmatprep.subr.mxu0 0.0
    %2255 = vmatpush2.msra.mxu0 0.0
    %2256 = vmatprep.subr.mxu0 0.0
    %2257 = vmatpush2.msra.mxu0 0.0
    %2258 = vmatprep.subr.mxu0 0.0
    %2259 = vmatpush2.msra.mxu0 0.0
    %2260 = vmatprep.subr.mxu0 0.0
    %2261 = vmatpush2.msra.mxu0 0.0
    %2262 = vmatprep.subr.mxu0 0.0
    %2263 = vmatpush2.msra.mxu0 0.0
    %2264 = vmatprep.subr.mxu0 0.0
    %2265 = vmatpush2.msra.mxu0 0.0
    %2266 = vmatprep.subr.mxu0 0.0
    %2267 = vmatpush2.msra.mxu0 0.0
    %2268 = vmatprep.subr.mxu0 0.0
    %2269 = vmatpush2.msra.mxu0 0.0
    %2270 = vmatprep.subr.mxu0 0.0
    %2271 = vmatpush2.msra.mxu0 0.0
    %2272 = vmatprep.subr.mxu0 0.0
    %2273 = vmatpush2.msra.mxu0 0.0
    %2274 = vmatprep.subr.mxu0 0.0
    %2275 = vmatpush2.msra.mxu0 0.0
    %2276 = vmatprep.subr.mxu0 0.0
    %2277 = vmatpush2.msra.mxu0 0.0
    %2278 = vmatprep.subr.mxu0 0.0
    %2279 = vmatpush2.msra.mxu0 0.0
    %2280 = vmatprep.mubr.f32.mxu0 0.0
    %2281 = vmatmul.mubr.f32.gmra.mxu0 %v1879
    %v2282 = vpop.f32.mrf.mxu0
    %v2283 = vadd.f32 %v2200, %v2282
    %v2284 = vpop.f32.mrf.mxu0
    %v2285 = vadd.f32 %v2201, %v2284
    %2286 = vmatprep.mubr.f32.mxu0 0.0
    %2287 = vmatmul.mubr.f32.gmra.mxu0 %v1880
    %v2288 = vpop.f32.mrf.mxu0
    %v2289 = vadd.f32 %v2202, %v2288
    %v2290 = vpop.f32.mrf.mxu0
    %v2291 = vadd.f32 %v2203, %v2290
    %2292 = vmatprep.mubr.f32.mxu0 0.0
    %2293 = vmatmul.mubr.f32.gmra.mxu0 %v1881
    %v2294 = vpop.f32.mrf.mxu0
    %v2295 = vadd.f32 %v2204, %v2294
    %v2296 = vpop.f32.mrf.mxu0
    %v2297 = vadd.f32 %v2205, %v2296
    %2298 = vmatprep.mubr.f32.mxu0 0.0
    %2299 = vmatmul.mubr.f32.gmra.mxu0 %v1882
    %v2300 = vpop.f32.mrf.mxu0
    %v2301 = vadd.f32 %v2206, %v2300
    %v2302 = vpop.f32.mrf.mxu0
    %v2303 = vadd.f32 %v2207, %v2302
    %2304 = vmatprep.mubr.f32.mxu0 0.0
    %2305 = vmatmul.mubr.f32.gmra.mxu0 %v1883
    %v2306 = vpop.f32.mrf.mxu0
    %v2307 = vadd.f32 %v2208, %v2306
    %v2308 = vpop.f32.mrf.mxu0
    %v2309 = vadd.f32 %v2209, %v2308
    %2310 = vmatprep.mubr.f32.mxu0 0.0
    %2311 = vmatmul.mubr.f32.gmra.mxu0 %v1884
    %v2312 = vpop.f32.mrf.mxu0
    %v2313 = vadd.f32 %v2210, %v2312
    %v2314 = vpop.f32.mrf.mxu0
    %v2315 = vadd.f32 %v2211, %v2314
    %2316 = vmatprep.mubr.f32.mxu0 0.0
    %2317 = vmatmul.mubr.f32.gmra.mxu0 %v1885
    %v2318 = vpop.f32.mrf.mxu0
    %v2319 = vadd.f32 %v2212, %v2318
    %v2320 = vpop.f32.mrf.mxu0
    %v2321 = vadd.f32 %v2213, %v2320
    %2322 = vmatprep.mubr.f32.mxu0 0.0
    %2323 = vmatmul.mubr.f32.gmra.mxu0 %v1886
    %v2324 = vpop.f32.mrf.mxu0
    %v2325 = vadd.f32 %v2214, %v2324
    %v2326 = vpop.f32.mrf.mxu0
    %v2327 = vadd.f32 %v2215, %v2326
    %2328 = vdwg.mxu0
    %2329 = vst [vmem:[#allocation3] sm:$0xff] %v2283
    %2330 = vst [vmem:[#allocation3 + $0x8] sm:$0xff] %v2285
    %2331 = vst [vmem:[#allocation3 + $0x10] sm:$0xff] %v2289
    %2332 = vst [vmem:[#allocation3 + $0x18] sm:$0xff] %v2291
    %2333 = vst [vmem:[#allocation3 + $0x20] sm:$0xff] %v2295
    %2334 = vst [vmem:[#allocation3 + $0x28] sm:$0xff] %v2297
    %2335 = vst [vmem:[#allocation3 + $0x30] sm:$0xff] %v2301
    %2336 = vst [vmem:[#allocation3 + $0x38] sm:$0xff] %v2303
    %2337 = vst [vmem:[#allocation3 + $0x40] sm:$0xff] %v2307
    %2338 = vst [vmem:[#allocation3 + $0x48] sm:$0xff] %v2309
    %2339 = vst [vmem:[#allocation3 + $0x50] sm:$0xff] %v2313
    %2340 = vst [vmem:[#allocation3 + $0x58] sm:$0xff] %v2315
    %2341 = vst [vmem:[#allocation3 + $0x60] sm:$0xff] %v2319
    %2342 = vst [vmem:[#allocation3 + $0x68] sm:$0xff] %v2321
    %2343 = vst [vmem:[#allocation3 + $0x70] sm:$0xff] %v2325
    %2344 = vst [vmem:[#allocation3 + $0x78] sm:$0xff] %v2327
    // Predicated region
    $region46: #{vanilla_rnn_sas_forward.1} parent=1 // pred_check
      _
    $region47: #{vanilla_rnn_sas_forward.1} parent=1 // pred_check_branch
      %2346 = sbr.rel (0) target = $region49
    $region48: #{vanilla_rnn_sas_forward.1} parent=1 // pred_region
      %s2348 = ssub.s32 2048, 2048
      %2349 = vsyncadd [#allocation4], %s2348
      %s2350 = sshll.u32 [#allocation3], 4
      %s2351 = int_to_ptr.vmem [resolvable:$true] %s2350
      %2356 = dma.vmem_to_hbm [thread:$0]  %s2351, 2048, %s11, [#allocation4], 256, 256, 16
    $region49: #{vanilla_rnn_sas_forward.1} parent=1 // pred_fallthru
      _
    // Predicated region
    $region50: #{vanilla_rnn_sas_forward.1} parent=1 // pred_check
      _
    $region51: #{vanilla_rnn_sas_forward.1} parent=1 // pred_check_branch
      %2358 = sbr.rel (0) target = $region53
    $region52: #{vanilla_rnn_sas_forward.1} parent=1 // pred_region
      _
    $region53: #{vanilla_rnn_sas_forward.1} parent=1 // pred_fallthru
      _
    // Predicated region
    $region54: #{vanilla_rnn_sas_forward.1} parent=1 // pred_check
      _
    $region55: #{vanilla_rnn_sas_forward.1} parent=1 // pred_check_branch
      %2360 = sbr.rel (0) target = $region57
    $region56: #{vanilla_rnn_sas_forward.1} parent=1 // pred_region
      %2361 = dma.done [#allocation4], 2048
    $region57: #{vanilla_rnn_sas_forward.1} parent=1 // pred_fallthru
      _
    // Predicated region
    $region58: #{vanilla_rnn_sas_forward.1} parent=1 // pred_check
      _
    $region59: #{vanilla_rnn_sas_forward.1} parent=1 // pred_check_branch
      %2363 = sbr.rel (0) target = $region61
    $region60: #{vanilla_rnn_sas_forward.1} parent=1 // pred_region
      _
    $region61: #{vanilla_rnn_sas_forward.1} parent=1 // pred_fallthru
      _
    %2364 = vsyncpa [#allocation4], 1

</llo_original>
